<compile_context>
chip_gen: v5e
topology: v5e:2x2
jax: 0.10.0
libtpu: 0.0.40
codegen_flags: <defaults>
</compile_context>

<pallas_src>
import jax
import jax.numpy as jnp
from jax import lax
from jax.experimental import pallas as pl
from jax.experimental.pallas import tpu as pltpu
import numpy as np


def _lstm_ctc_kernel(x_ref, len_ref, wih_ref, whh_ref, b_ref, wfc_ref, bfc_ref,
                     out_ref, gx_s, hb_s):
    TB, H2 = hb_s.shape                        # rows = T*B, H2 = 2*hidden
    B = len_ref.shape[0]
    T = TB // B
    H = H2 // 2

    # Loop-invariant values (hoisted out of the recurrence).
    whh = whh_ref[...]                                   # (2H, 8H) block-diagonal
    lens_b = jnp.broadcast_to(len_ref[...], (B, H2))     # (B, 2H) int32
    lane = lax.broadcasted_iota(jnp.int32, (B, H2), 1)
    is_fwd = lane < H                                    # fwd lanes [0:H), rev [H:2H)

    # --- 1. Input projection for BOTH directions / all timesteps: one matmul.
    #        Row block k holds fwd gates for time k and rev gates for time T-1-k
    #        (x was fed as [x_t | x_{T-1-t}]); lanes [i_f,i_r,f_f,f_r,o_f,o_r,g_f,g_r].
    gx_s[...] = (jnp.dot(x_ref[...], wih_ref[...],
                         preferred_element_type=jnp.float32) + b_ref[...])

    # --- 2. Fused fwd+rev recurrence: one matmul, one sigmoid, two tanh per step;
    #        h/c state lives in registers as fori_loop carries.
    def body(k, carry):
        h_cat, c_cat = carry
        row_f = pl.multiple_of(k * B, B)                 # rows of step k (fwd time k)
        row_r = pl.multiple_of((T - 1 - k) * B, B)       # rows of rev output time T-1-k

        gates = gx_s[pl.ds(row_f, B), :] + jnp.dot(
            h_cat, whh, preferred_element_type=jnp.float32)        # (B, 8H)
        sig = jax.nn.sigmoid(gates[:, 0:3 * H2])         # i/f/o of both directions
        g_cat = jnp.tanh(gates[:, 3 * H2:4 * H2])        # g of both directions
        i_cat = sig[:, 0:H2]
        f_cat = sig[:, H2:2 * H2]
        o_cat = sig[:, 2 * H2:3 * H2]
        c_new = f_cat * c_cat + i_cat * g_cat            # [c_f | c_r]
        h_new = o_cat * jnp.tanh(c_new)                  # [h_f | h_r]

        # Packed-sequence emulation: fwd lanes live while k < len,
        # rev lanes while (T-1-k) < len; frozen state / zeroed output elsewhere.
        t_eff = jnp.where(is_fwd, k, T - 1 - k)
        p = t_eff < lens_b                               # (B, 2H) bool
        h_masked = jnp.where(p, h_new, 0.0)
        hb_s[pl.ds(row_f, B), 0:H] = h_masked[:, 0:H]
        hb_s[pl.ds(row_r, B), H:H2] = h_masked[:, H:H2]
        return jnp.where(p, h_new, h_cat), jnp.where(p, c_new, c_cat)

    zero = jnp.zeros((B, H2), jnp.float32)
    lax.fori_loop(0, T, body, (zero, zero),
                  unroll=True if T <= 32 else 8)

    # --- 3. Deferred, lane-dense fc: single (T*B, 2H) @ (2H, Cp) matmul.
    out_ref[...] = (jnp.dot(hb_s[...], wfc_ref[...],
                            preferred_element_type=jnp.float32) + bfc_ref[...])


def _round_up(n, m):
    return ((n + m - 1) // m) * m


def _fuse_gate_weights(w_f, w_r, H):
    """(K,4H) per direction, PyTorch gate order [i,f,g,o] -> (2K,8H) block weight with
    lane order [i_f,i_r,f_f,f_r,o_f,o_r,g_f,g_r]; row block 0 feeds fwd, block 1 rev."""
    K = w_f.shape[0]
    z = jnp.zeros((K, H), w_f.dtype)

    def blocks(w):
        return w[:, 0:H], w[:, H:2 * H], w[:, 2 * H:3 * H], w[:, 3 * H:4 * H]

    i_f, f_f, g_f, o_f = blocks(w_f)
    i_r, f_r, g_r, o_r = blocks(w_r)
    top = jnp.concatenate([i_f, z, f_f, z, o_f, z, g_f, z], axis=1)
    bot = jnp.concatenate([z, i_r, z, f_r, z, o_r, z, g_r], axis=1)
    return jnp.concatenate([top, bot], axis=0)


def _fuse_gate_bias(b_f, b_r, H):
    def blocks(b):
        return b[:, 0:H], b[:, H:2 * H], b[:, 2 * H:3 * H], b[:, 3 * H:4 * H]

    i_f, f_f, g_f, o_f = blocks(b_f)
    i_r, f_r, g_r, o_r = blocks(b_r)
    return jnp.concatenate([i_f, i_r, f_f, f_r, o_f, o_r, g_f, g_r], axis=1)


def stroke_ctc_forward(x, lengths, params):
    """x: (B, T, D) f32, lengths: (B,) int -> (B, T, num_classes) f32.

    Computed over the full static T (jit-friendly, no host sync): rows with
    t >= lengths[b] equal the fc bias, exactly what pad_packed_sequence + Linear
    gives for positions inside max(lengths). Slice [:, :max(lengths)] outside
    the traced path if the PyTorch-shaped result is needed.
    """
    B, T, D = x.shape
    H = params["whh_f"].shape[0]
    C = params["wfc"].shape[1]

    Bp = _round_up(max(B, 8), 8)      # sublane-aligned batch
    Cp = _round_up(C, 128)            # lane-dense classes
    H2 = 2 * H

    # Weight plumbing (tiny): fused gate layout for input/recurrent weights and bias,
    # single fc weight (rows [0:H)=fwd, [H:2H)=rev matches the [h_f|h_r] buffer).
    wih = _fuse_gate_weights(params["wih_f"], params["wih_r"], H)    # (2D, 8H)
    whh = _fuse_gate_weights(params["whh_f"], params["whh_r"], H)    # (2H, 8H)
    b = _fuse_gate_bias(params["b_f"], params["b_r"], H)             # (1, 8H)
    wfc = jnp.pad(params["wfc"], ((0, 0), (0, Cp - C)))              # (2H, Cp)
    bfc = jnp.pad(params["bfc"], ((0, 0), (0, Cp - C)))              # (1, Cp)

    # Activations: pad batch to Bp (padded rows get length 0 -> bias rows, dropped),
    # go time-major and feed [x_t | x_{T-1-t}] so the fused input projection produces
    # fwd gates for time k and rev gates for time T-1-k in the same row block.
    x_p = jnp.pad(x.astype(jnp.float32), ((0, Bp - B), (0, 0), (0, 0)))
    lens_p = jnp.pad(lengths.astype(jnp.int32), (0, Bp - B)).reshape(Bp, 1)
    x_tm = jnp.transpose(x_p, (1, 0, 2))                             # (T, Bp, D)
    x_cat = jnp.concatenate([x_tm, x_tm[::-1]], axis=-1).reshape(T * Bp, 2 * D)

    # Explicit scoped-VMEM budget (default is 16/32 MiB depending on chip).
    rows = T * Bp
    est = rows * 4 * (_round_up(2 * D, 128) + _round_up(8 * H, 128)
                      + _round_up(H2, 128) + Cp)
    vmem_limit = int(min(max(2 * est + (4 << 20), 16 << 20), 56 << 20))

    vmem = pl.BlockSpec(memory_space=pltpu.MemorySpace.VMEM)
    out_flat = pl.pallas_call(
        _lstm_ctc_kernel,
        out_shape=jax.ShapeDtypeStruct((T * Bp, Cp), jnp.float32),
        in_specs=[vmem] * 7,
        out_specs=vmem,
        scratch_shapes=[
            pltpu.VMEM((T * Bp, 8 * H), jnp.float32),   # gx (both directions)
            pltpu.VMEM((T * Bp, H2), jnp.float32),      # masked hidden [h_f | h_r]
        ],
        compiler_params=pltpu.CompilerParams(vmem_limit_bytes=vmem_limit),
    )(x_cat, lens_p, wih, whh, b, wfc, bfc)

    out = out_flat.reshape(T, Bp, Cp)[:, :B, :C]        # drop batch/class padding
    return jnp.transpose(out, (1, 0, 2))                # batch-first (B, T, C)


def make_params(key, input_dim, hidden_dim, num_classes):
    ks = jax.random.split(key, 10)
    u = lambda k, shape: jax.random.uniform(k, shape, jnp.float32, -0.1, 0.1)
    H4 = 4 * hidden_dim
    return {
        # LSTM weights stored transposed (in_features, 4H), PyTorch gate order [i,f,g,o].
        "wih_f": u(ks[0], (input_dim, H4)),
        "whh_f": u(ks[1], (hidden_dim, H4)),
        "b_f":   u(ks[2], (1, H4)),           # = b_ih + b_hh (combined)
        "wih_r": u(ks[3], (input_dim, H4)),
        "whh_r": u(ks[4], (hidden_dim, H4)),
        "b_r":   u(ks[5], (1, H4)),
        "wfc":   u(ks[6], (2 * hidden_dim, num_classes)),
        "bfc":   u(ks[7], (1, num_classes)),
    }


def ref_forward(x, lengths, p):
    """Pure-JAX reference with identical packed-sequence semantics (gate order [i,f,g,o])."""
    B, T, D = x.shape
    t_out = int(jnp.max(lengths))
    x = x[:, :t_out]
    H = p["whh_f"].shape[0]

    def cell(x_t, h, c, wih, whh, b):
        g = x_t @ wih + h @ whh + b
        i = jax.nn.sigmoid(g[:, :H]); f = jax.nn.sigmoid(g[:, H:2 * H])
        gg = jnp.tanh(g[:, 2 * H:3 * H]); o = jax.nn.sigmoid(g[:, 3 * H:])
        c2 = f * c + i * gg
        return o * jnp.tanh(c2), c2

    masks = [(t < lengths).reshape(B, 1).astype(jnp.float32) for t in range(t_out)]

    h = jnp.zeros((B, H)); c = jnp.zeros((B, H)); fwd = []
    for t in range(t_out):
        h2, c2 = cell(x[:, t], h, c, p["wih_f"], p["whh_f"], p["b_f"])
        m = masks[t]
        h = m * h2 + (1 - m) * h; c = m * c2 + (1 - m) * c
        fwd.append(m * h2)
    fwd = jnp.stack(fwd, axis=1)

    h = jnp.zeros((B, H)); c = jnp.zeros((B, H)); bwd = [None] * t_out
    for t in range(t_out - 1, -1, -1):
        h2, c2 = cell(x[:, t], h, c, p["wih_r"], p["whh_r"], p["b_r"])
        m = masks[t]
        h = m * h2 + (1 - m) * h; c = m * c2 + (1 - m) * c
        bwd[t] = m * h2
    bwd = jnp.stack(bwd, axis=1)

    hcat = jnp.concatenate([fwd, bwd], axis=-1)
    return hcat @ p["wfc"] + p["bfc"]


if __name__ == "__main__":
    # Small shapes: stroke features D=8, hidden=32, classes=30, batch=2, seq=8.
    B, T, D, H, C = 2, 8, 8, 32, 30
    key = jax.random.PRNGKey(0)
    k_x, k_p = jax.random.split(key)

    x = jax.random.normal(k_x, (B, T, D), dtype=jnp.float32)
    lengths = jnp.array([8, 5], dtype=jnp.int32)
    params = make_params(k_p, D, H, C)

    forward = jax.jit(stroke_ctc_forward)
    out_full = jax.block_until_ready(forward(x, lengths, params))   # (B, T, C)

    # Match pad_packed_sequence output length (one-off host read, outside the jit).
    t_out = int(lengths.max())
    out = np.asarray(out_full)[:, :t_out, :]

    ref = ref_forward(x, lengths, params)
    np.testing.assert_allclose(out, np.asarray(ref), atol=2e-3, rtol=2e-3)

    assert out.shape == (B, t_out, C)
    print("KERNEL_OK")
</pallas_src>

<mosaic_0001>
module attributes {stable_mosaic.version = 11 : i64} {
  func.func @_lstm_ctc_kernel(%arg0: memref<64x16xf32, #tpu.memory_space<vmem>>, %arg1: memref<8x1xi32, #tpu.memory_space<vmem>>, %arg2: memref<16x256xf32, #tpu.memory_space<vmem>>, %arg3: memref<64x256xf32, #tpu.memory_space<vmem>>, %arg4: memref<1x256xf32, #tpu.memory_space<vmem>>, %arg5: memref<64x128xf32, #tpu.memory_space<vmem>>, %arg6: memref<1x128xf32, #tpu.memory_space<vmem>>, %arg7: memref<64x128xf32, #tpu.memory_space<vmem>>, %arg8: memref<64x256xf32, #tpu.memory_space<vmem>>, %arg9: memref<64x64xf32, #tpu.memory_space<vmem>>) attributes {dimension_semantics = [], scalar_prefetch = 0 : i64, scratch_operands = 2 : i64, tpu.core_type = #tpu.core_type<tc>} {
    %c0 = arith.constant 0 : index
    %c0_0 = arith.constant 0 : index
    %0 = vector.load %arg3[%c0, %c0_0] : memref<64x256xf32, #tpu.memory_space<vmem>>, vector<64x256xf32>
    %c0_1 = arith.constant 0 : index
    %c0_2 = arith.constant 0 : index
    %1 = vector.load %arg1[%c0_1, %c0_2] : memref<8x1xi32, #tpu.memory_space<vmem>>, vector<8x1xi32>
    %2 = vector.shape_cast %1 : vector<8x1xi32> to vector<8x1xi32>
    %3 = vector.broadcast %2 : vector<8x1xi32> to vector<8x64xi32>
    %4 = tpu.iota {dimensions = array<i32: 1>} : vector<8x64xi32>
    %c32_i32 = arith.constant 32 : i32
    %5 = vector.broadcast %c32_i32 : i32 to vector<8x64xi32>
    %6 = arith.cmpi slt, %4, %5 : vector<8x64xi32>
    %c0_3 = arith.constant 0 : index
    %c0_4 = arith.constant 0 : index
    %7 = vector.load %arg0[%c0_3, %c0_4] : memref<64x16xf32, #tpu.memory_space<vmem>>, vector<64x16xf32>
    %c0_5 = arith.constant 0 : index
    %c0_6 = arith.constant 0 : index
    %8 = vector.load %arg2[%c0_5, %c0_6] : memref<16x256xf32, #tpu.memory_space<vmem>>, vector<16x256xf32>
    %cst = arith.constant dense<0.000000e+00> : vector<64x256xf32>
    %9 = tpu.matmul %7, %8, %cst {dimension_numbers = #tpu.dot_dimension_numbers<[1], [0], [0], [1], [0, 0, 1, 1], [], []>} : vector<64x16xf32>, vector<16x256xf32>, vector<64x256xf32> -> vector<64x256xf32>
    %c0_7 = arith.constant 0 : index
    %c0_8 = arith.constant 0 : index
    %10 = vector.load %arg4[%c0_7, %c0_8] : memref<1x256xf32, #tpu.memory_space<vmem>>, vector<1x256xf32>
    %11 = vector.broadcast %10 : vector<1x256xf32> to vector<64x256xf32>
    %12 = arith.addf %9, %11 : vector<64x256xf32>
    %c0_9 = arith.constant 0 : index
    %c0_10 = arith.constant 0 : index
    %13 = vector.load %arg8[%c0_9, %c0_10] : memref<64x256xf32, #tpu.memory_space<vmem>>, vector<64x256xf32>
    tpu.vector_store %arg8[%c0_9, %c0_10], %12 {strides = array<i32>} : memref<64x256xf32, #tpu.memory_space<vmem>>, vector<64x256xf32>,
    %cst_11 = arith.constant 0.000000e+00 : f32
    %14 = vector.broadcast %cst_11 : f32 to vector<8x64xf32>
    %c0_i32 = arith.constant 0 : i32
    %c8_i32 = arith.constant 8 : i32
    %15 = arith.muli %c0_i32, %c8_i32 : i32
    %16 = tpu.assume_multiple %15, 8 : i32
    %c7_i32 = arith.constant 7 : i32
    %17 = arith.subi %c7_i32, %c0_i32 : i32
    %c8_i32_12 = arith.constant 8 : i32
    %18 = arith.muli %17, %c8_i32_12 : i32
    %19 = tpu.assume_multiple %18, 8 : i32
    %20 = arith.index_cast %16 : i32 to index
    %c0_13 = arith.constant 0 : index
    %21 = vector.load %arg8[%20, %c0_13] : memref<64x256xf32, #tpu.memory_space<vmem>>, vector<8x256xf32>
    %cst_14 = arith.constant dense<0.000000e+00> : vector<8x256xf32>
    %22 = tpu.matmul %14, %0, %cst_14 {dimension_numbers = #tpu.dot_dimension_numbers<[1], [0], [0], [1], [0, 0, 1, 1], [], []>} : vector<8x64xf32>, vector<64x256xf32>, vector<8x256xf32> -> vector<8x256xf32>
    %23 = arith.addf %21, %22 : vector<8x256xf32>
    %24 = vector.extract_strided_slice %23 {offsets = [0, 0], sizes = [8, 192], strides = [1, 1]} : vector<8x256xf32> to vector<8x192xf32>
    %25 = arith.negf %24 : vector<8x192xf32>
    %26 = math.exp %25 : vector<8x192xf32>
    %cst_15 = arith.constant 1.000000e+00 : f32
    %27 = vector.broadcast %cst_15 : f32 to vector<8x192xf32>
    %28 = arith.addf %27, %26 : vector<8x192xf32>
    %29 = arith.divf %27, %28 : vector<8x192xf32>
    %30 = vector.extract_strided_slice %23 {offsets = [0, 192], sizes = [8, 64], strides = [1, 1]} : vector<8x256xf32> to vector<8x64xf32>
    %31 = math.tanh %30 : vector<8x64xf32>
    %32 = vector.extract_strided_slice %29 {offsets = [0, 0], sizes = [8, 64], strides = [1, 1]} : vector<8x192xf32> to vector<8x64xf32>
    %33 = vector.extract_strided_slice %29 {offsets = [0, 64], sizes = [8, 64], strides = [1, 1]} : vector<8x192xf32> to vector<8x64xf32>
    %34 = vector.extract_strided_slice %29 {offsets = [0, 128], sizes = [8, 64], strides = [1, 1]} : vector<8x192xf32> to vector<8x64xf32>
    %35 = arith.mulf %33, %14 : vector<8x64xf32>
    %36 = arith.mulf %32, %31 : vector<8x64xf32>
    %37 = arith.addf %35, %36 : vector<8x64xf32>
    %38 = math.tanh %37 : vector<8x64xf32>
    %39 = arith.mulf %34, %38 : vector<8x64xf32>
    %c7_i32_16 = arith.constant 7 : i32
    %40 = arith.subi %c7_i32_16, %c0_i32 : i32
    %41 = vector.broadcast %c0_i32 : i32 to vector<8x64xi32>
    %42 = vector.broadcast %40 : i32 to vector<8x64xi32>
    %43 = arith.select %6, %41, %42 : vector<8x64xi1>, vector<8x64xi32>
    %44 = arith.cmpi slt, %43, %3 : vector<8x64xi32>
    %cst_17 = arith.constant 0.000000e+00 : f32
    %45 = vector.broadcast %cst_17 : f32 to vector<8x64xf32>
    %46 = arith.select %44, %39, %45 : vector<8x64xi1>, vector<8x64xf32>
    %47 = vector.extract_strided_slice %46 {offsets = [0, 0], sizes = [8, 32], strides = [1, 1]} : vector<8x64xf32> to vector<8x32xf32>
    %48 = arith.index_cast %16 : i32 to index
    %c0_18 = arith.constant 0 : index
    %49 = vector.load %arg9[%48, %c0_18] : memref<64x64xf32, #tpu.memory_space<vmem>>, vector<8x32xf32>
    tpu.vector_store %arg9[%48, %c0_18], %47 {strides = array<i32>} : memref<64x64xf32, #tpu.memory_space<vmem>>, vector<8x32xf32>,
    %50 = vector.extract_strided_slice %46 {offsets = [0, 32], sizes = [8, 32], strides = [1, 1]} : vector<8x64xf32> to vector<8x32xf32>
    %51 = arith.index_cast %19 : i32 to index
    %c32 = arith.constant 32 : index
    %52 = vector.load %arg9[%51, %c32] : memref<64x64xf32, #tpu.memory_space<vmem>>, vector<8x32xf32>
    tpu.vector_store %arg9[%51, %c32], %50 {strides = array<i32>} : memref<64x64xf32, #tpu.memory_space<vmem>>, vector<8x32xf32>,
    %53 = arith.select %44, %39, %14 : vector<8x64xi1>, vector<8x64xf32>
    %54 = arith.select %44, %37, %14 : vector<8x64xi1>, vector<8x64xf32>
    %c1_i32 = arith.constant 1 : i32
    %c8_i32_19 = arith.constant 8 : i32
    %55 = arith.muli %c1_i32, %c8_i32_19 : i32
    %56 = tpu.assume_multiple %55, 8 : i32
    %c7_i32_20 = arith.constant 7 : i32
    %57 = arith.subi %c7_i32_20, %c1_i32 : i32
    %c8_i32_21 = arith.constant 8 : i32
    %58 = arith.muli %57, %c8_i32_21 : i32
    %59 = tpu.assume_multiple %58, 8 : i32
    %60 = arith.index_cast %56 : i32 to index
    %c0_22 = arith.constant 0 : index
    %61 = vector.load %arg8[%60, %c0_22] : memref<64x256xf32, #tpu.memory_space<vmem>>, vector<8x256xf32>
    %cst_23 = arith.constant dense<0.000000e+00> : vector<8x256xf32>
    %62 = tpu.matmul %53, %0, %cst_23 {dimension_numbers = #tpu.dot_dimension_numbers<[1], [0], [0], [1], [0, 0, 1, 1], [], []>} : vector<8x64xf32>, vector<64x256xf32>, vector<8x256xf32> -> vector<8x256xf32>
    %63 = arith.addf %61, %62 : vector<8x256xf32>
    %64 = vector.extract_strided_slice %63 {offsets = [0, 0], sizes = [8, 192], strides = [1, 1]} : vector<8x256xf32> to vector<8x192xf32>
    %65 = arith.negf %64 : vector<8x192xf32>
    %66 = math.exp %65 : vector<8x192xf32>
    %cst_24 = arith.constant 1.000000e+00 : f32
    %67 = vector.broadcast %cst_24 : f32 to vector<8x192xf32>
    %68 = arith.addf %67, %66 : vector<8x192xf32>
    %69 = arith.divf %67, %68 : vector<8x192xf32>
    %70 = vector.extract_strided_slice %63 {offsets = [0, 192], sizes = [8, 64], strides = [1, 1]} : vector<8x256xf32> to vector<8x64xf32>
    %71 = math.tanh %70 : vector<8x64xf32>
    %72 = vector.extract_strided_slice %69 {offsets = [0, 0], sizes = [8, 64], strides = [1, 1]} : vector<8x192xf32> to vector<8x64xf32>
    %73 = vector.extract_strided_slice %69 {offsets = [0, 64], sizes = [8, 64], strides = [1, 1]} : vector<8x192xf32> to vector<8x64xf32>
    %74 = vector.extract_strided_slice %69 {offsets = [0, 128], sizes = [8, 64], strides = [1, 1]} : vector<8x192xf32> to vector<8x64xf32>
    %75 = arith.mulf %73, %54 : vector<8x64xf32>
    %76 = arith.mulf %72, %71 : vector<8x64xf32>
    %77 = arith.addf %75, %76 : vector<8x64xf32>
    %78 = math.tanh %77 : vector<8x64xf32>
    %79 = arith.mulf %74, %78 : vector<8x64xf32>
    %c7_i32_25 = arith.constant 7 : i32
    %80 = arith.subi %c7_i32_25, %c1_i32 : i32
    %81 = vector.broadcast %c1_i32 : i32 to vector<8x64xi32>
    %82 = vector.broadcast %80 : i32 to vector<8x64xi32>
    %83 = arith.select %6, %81, %82 : vector<8x64xi1>, vector<8x64xi32>
    %84 = arith.cmpi slt, %83, %3 : vector<8x64xi32>
    %cst_26 = arith.constant 0.000000e+00 : f32
    %85 = vector.broadcast %cst_26 : f32 to vector<8x64xf32>
    %86 = arith.select %84, %79, %85 : vector<8x64xi1>, vector<8x64xf32>
    %87 = vector.extract_strided_slice %86 {offsets = [0, 0], sizes = [8, 32], strides = [1, 1]} : vector<8x64xf32> to vector<8x32xf32>
    %88 = arith.index_cast %56 : i32 to index
    %c0_27 = arith.constant 0 : index
    %89 = vector.load %arg9[%88, %c0_27] : memref<64x64xf32, #tpu.memory_space<vmem>>, vector<8x32xf32>
    tpu.vector_store %arg9[%88, %c0_27], %87 {strides = array<i32>} : memref<64x64xf32, #tpu.memory_space<vmem>>, vector<8x32xf32>,
    %90 = vector.extract_strided_slice %86 {offsets = [0, 32], sizes = [8, 32], strides = [1, 1]} : vector<8x64xf32> to vector<8x32xf32>
    %91 = arith.index_cast %59 : i32 to index
    %c32_28 = arith.constant 32 : index
    %92 = vector.load %arg9[%91, %c32_28] : memref<64x64xf32, #tpu.memory_space<vmem>>, vector<8x32xf32>
    tpu.vector_store %arg9[%91, %c32_28], %90 {strides = array<i32>} : memref<64x64xf32, #tpu.memory_space<vmem>>, vector<8x32xf32>,
    %93 = arith.select %84, %79, %53 : vector<8x64xi1>, vector<8x64xf32>
    %94 = arith.select %84, %77, %54 : vector<8x64xi1>, vector<8x64xf32>
    %c2_i32 = arith.constant 2 : i32
    %c8_i32_29 = arith.constant 8 : i32
    %95 = arith.muli %c2_i32, %c8_i32_29 : i32
    %96 = tpu.assume_multiple %95, 8 : i32
    %c7_i32_30 = arith.constant 7 : i32
    %97 = arith.subi %c7_i32_30, %c2_i32 : i32
    %c8_i32_31 = arith.constant 8 : i32
    %98 = arith.muli %97, %c8_i32_31 : i32
    %99 = tpu.assume_multiple %98, 8 : i32
    %100 = arith.index_cast %96 : i32 to index
    %c0_32 = arith.constant 0 : index
    %101 = vector.load %arg8[%100, %c0_32] : memref<64x256xf32, #tpu.memory_space<vmem>>, vector<8x256xf32>
    %cst_33 = arith.constant dense<0.000000e+00> : vector<8x256xf32>
    %102 = tpu.matmul %93, %0, %cst_33 {dimension_numbers = #tpu.dot_dimension_numbers<[1], [0], [0], [1], [0, 0, 1, 1], [], []>} : vector<8x64xf32>, vector<64x256xf32>, vector<8x256xf32> -> vector<8x256xf32>
    %103 = arith.addf %101, %102 : vector<8x256xf32>
    %104 = vector.extract_strided_slice %103 {offsets = [0, 0], sizes = [8, 192], strides = [1, 1]} : vector<8x256xf32> to vector<8x192xf32>
    %105 = arith.negf %104 : vector<8x192xf32>
    %106 = math.exp %105 : vector<8x192xf32>
    %cst_34 = arith.constant 1.000000e+00 : f32
    %107 = vector.broadcast %cst_34 : f32 to vector<8x192xf32>
    %108 = arith.addf %107, %106 : vector<8x192xf32>
    %109 = arith.divf %107, %108 : vector<8x192xf32>
    %110 = vector.extract_strided_slice %103 {offsets = [0, 192], sizes = [8, 64], strides = [1, 1]} : vector<8x256xf32> to vector<8x64xf32>
    %111 = math.tanh %110 : vector<8x64xf32>
    %112 = vector.extract_strided_slice %109 {offsets = [0, 0], sizes = [8, 64], strides = [1, 1]} : vector<8x192xf32> to vector<8x64xf32>
    %113 = vector.extract_strided_slice %109 {offsets = [0, 64], sizes = [8, 64], strides = [1, 1]} : vector<8x192xf32> to vector<8x64xf32>
    %114 = vector.extract_strided_slice %109 {offsets = [0, 128], sizes = [8, 64], strides = [1, 1]} : vector<8x192xf32> to vector<8x64xf32>
    %115 = arith.mulf %113, %94 : vector<8x64xf32>
    %116 = arith.mulf %112, %111 : vector<8x64xf32>
    %117 = arith.addf %115, %116 : vector<8x64xf32>
    %118 = math.tanh %117 : vector<8x64xf32>
    %119 = arith.mulf %114, %118 : vector<8x64xf32>
    %c7_i32_35 = arith.constant 7 : i32
    %120 = arith.subi %c7_i32_35, %c2_i32 : i32
    %121 = vector.broadcast %c2_i32 : i32 to vector<8x64xi32>
    %122 = vector.broadcast %120 : i32 to vector<8x64xi32>
    %123 = arith.select %6, %121, %122 : vector<8x64xi1>, vector<8x64xi32>
    %124 = arith.cmpi slt, %123, %3 : vector<8x64xi32>
    %cst_36 = arith.constant 0.000000e+00 : f32
    %125 = vector.broadcast %cst_36 : f32 to vector<8x64xf32>
    %126 = arith.select %124, %119, %125 : vector<8x64xi1>, vector<8x64xf32>
    %127 = vector.extract_strided_slice %126 {offsets = [0, 0], sizes = [8, 32], strides = [1, 1]} : vector<8x64xf32> to vector<8x32xf32>
    %128 = arith.index_cast %96 : i32 to index
    %c0_37 = arith.constant 0 : index
    %129 = vector.load %arg9[%128, %c0_37] : memref<64x64xf32, #tpu.memory_space<vmem>>, vector<8x32xf32>
    tpu.vector_store %arg9[%128, %c0_37], %127 {strides = array<i32>} : memref<64x64xf32, #tpu.memory_space<vmem>>, vector<8x32xf32>,
    %130 = vector.extract_strided_slice %126 {offsets = [0, 32], sizes = [8, 32], strides = [1, 1]} : vector<8x64xf32> to vector<8x32xf32>
    %131 = arith.index_cast %99 : i32 to index
    %c32_38 = arith.constant 32 : index
    %132 = vector.load %arg9[%131, %c32_38] : memref<64x64xf32, #tpu.memory_space<vmem>>, vector<8x32xf32>
    tpu.vector_store %arg9[%131, %c32_38], %130 {strides = array<i32>} : memref<64x64xf32, #tpu.memory_space<vmem>>, vector<8x32xf32>,
    %133 = arith.select %124, %119, %93 : vector<8x64xi1>, vector<8x64xf32>
    %134 = arith.select %124, %117, %94 : vector<8x64xi1>, vector<8x64xf32>
    %c3_i32 = arith.constant 3 : i32
    %c8_i32_39 = arith.constant 8 : i32
    %135 = arith.muli %c3_i32, %c8_i32_39 : i32
    %136 = tpu.assume_multiple %135, 8 : i32
    %c7_i32_40 = arith.constant 7 : i32
    %137 = arith.subi %c7_i32_40, %c3_i32 : i32
    %c8_i32_41 = arith.constant 8 : i32
    %138 = arith.muli %137, %c8_i32_41 : i32
    %139 = tpu.assume_multiple %138, 8 : i32
    %140 = arith.index_cast %136 : i32 to index
    %c0_42 = arith.constant 0 : index
    %141 = vector.load %arg8[%140, %c0_42] : memref<64x256xf32, #tpu.memory_space<vmem>>, vector<8x256xf32>
    %cst_43 = arith.constant dense<0.000000e+00> : vector<8x256xf32>
    %142 = tpu.matmul %133, %0, %cst_43 {dimension_numbers = #tpu.dot_dimension_numbers<[1], [0], [0], [1], [0, 0, 1, 1], [], []>} : vector<8x64xf32>, vector<64x256xf32>, vector<8x256xf32> -> vector<8x256xf32>
    %143 = arith.addf %141, %142 : vector<8x256xf32>
    %144 = vector.extract_strided_slice %143 {offsets = [0, 0], sizes = [8, 192], strides = [1, 1]} : vector<8x256xf32> to vector<8x192xf32>
    %145 = arith.negf %144 : vector<8x192xf32>
    %146 = math.exp %145 : vector<8x192xf32>
    %cst_44 = arith.constant 1.000000e+00 : f32
    %147 = vector.broadcast %cst_44 : f32 to vector<8x192xf32>
    %148 = arith.addf %147, %146 : vector<8x192xf32>
    %149 = arith.divf %147, %148 : vector<8x192xf32>
    %150 = vector.extract_strided_slice %143 {offsets = [0, 192], sizes = [8, 64], strides = [1, 1]} : vector<8x256xf32> to vector<8x64xf32>
    %151 = math.tanh %150 : vector<8x64xf32>
    %152 = vector.extract_strided_slice %149 {offsets = [0, 0], sizes = [8, 64], strides = [1, 1]} : vector<8x192xf32> to vector<8x64xf32>
    %153 = vector.extract_strided_slice %149 {offsets = [0, 64], sizes = [8, 64], strides = [1, 1]} : vector<8x192xf32> to vector<8x64xf32>
    %154 = vector.extract_strided_slice %149 {offsets = [0, 128], sizes = [8, 64], strides = [1, 1]} : vector<8x192xf32> to vector<8x64xf32>
    %155 = arith.mulf %153, %134 : vector<8x64xf32>
    %156 = arith.mulf %152, %151 : vector<8x64xf32>
    %157 = arith.addf %155, %156 : vector<8x64xf32>
    %158 = math.tanh %157 : vector<8x64xf32>
    %159 = arith.mulf %154, %158 : vector<8x64xf32>
    %c7_i32_45 = arith.constant 7 : i32
    %160 = arith.subi %c7_i32_45, %c3_i32 : i32
    %161 = vector.broadcast %c3_i32 : i32 to vector<8x64xi32>
    %162 = vector.broadcast %160 : i32 to vector<8x64xi32>
    %163 = arith.select %6, %161, %162 : vector<8x64xi1>, vector<8x64xi32>
    %164 = arith.cmpi slt, %163, %3 : vector<8x64xi32>
    %cst_46 = arith.constant 0.000000e+00 : f32
    %165 = vector.broadcast %cst_46 : f32 to vector<8x64xf32>
    %166 = arith.select %164, %159, %165 : vector<8x64xi1>, vector<8x64xf32>
    %167 = vector.extract_strided_slice %166 {offsets = [0, 0], sizes = [8, 32], strides = [1, 1]} : vector<8x64xf32> to vector<8x32xf32>
    %168 = arith.index_cast %136 : i32 to index
    %c0_47 = arith.constant 0 : index
    %169 = vector.load %arg9[%168, %c0_47] : memref<64x64xf32, #tpu.memory_space<vmem>>, vector<8x32xf32>
    tpu.vector_store %arg9[%168, %c0_47], %167 {strides = array<i32>} : memref<64x64xf32, #tpu.memory_space<vmem>>, vector<8x32xf32>,
    %170 = vector.extract_strided_slice %166 {offsets = [0, 32], sizes = [8, 32], strides = [1, 1]} : vector<8x64xf32> to vector<8x32xf32>
    %171 = arith.index_cast %139 : i32 to index
    %c32_48 = arith.constant 32 : index
    %172 = vector.load %arg9[%171, %c32_48] : memref<64x64xf32, #tpu.memory_space<vmem>>, vector<8x32xf32>
    tpu.vector_store %arg9[%171, %c32_48], %170 {strides = array<i32>} : memref<64x64xf32, #tpu.memory_space<vmem>>, vector<8x32xf32>,
    %173 = arith.select %164, %159, %133 : vector<8x64xi1>, vector<8x64xf32>
    %174 = arith.select %164, %157, %134 : vector<8x64xi1>, vector<8x64xf32>
    %c4_i32 = arith.constant 4 : i32
    %c8_i32_49 = arith.constant 8 : i32
    %175 = arith.muli %c4_i32, %c8_i32_49 : i32
    %176 = tpu.assume_multiple %175, 8 : i32
    %c7_i32_50 = arith.constant 7 : i32
    %177 = arith.subi %c7_i32_50, %c4_i32 : i32
    %c8_i32_51 = arith.constant 8 : i32
    %178 = arith.muli %177, %c8_i32_51 : i32
    %179 = tpu.assume_multiple %178, 8 : i32
    %180 = arith.index_cast %176 : i32 to index
    %c0_52 = arith.constant 0 : index
    %181 = vector.load %arg8[%180, %c0_52] : memref<64x256xf32, #tpu.memory_space<vmem>>, vector<8x256xf32>
    %cst_53 = arith.constant dense<0.000000e+00> : vector<8x256xf32>
    %182 = tpu.matmul %173, %0, %cst_53 {dimension_numbers = #tpu.dot_dimension_numbers<[1], [0], [0], [1], [0, 0, 1, 1], [], []>} : vector<8x64xf32>, vector<64x256xf32>, vector<8x256xf32> -> vector<8x256xf32>
    %183 = arith.addf %181, %182 : vector<8x256xf32>
    %184 = vector.extract_strided_slice %183 {offsets = [0, 0], sizes = [8, 192], strides = [1, 1]} : vector<8x256xf32> to vector<8x192xf32>
    %185 = arith.negf %184 : vector<8x192xf32>
    %186 = math.exp %185 : vector<8x192xf32>
    %cst_54 = arith.constant 1.000000e+00 : f32
    %187 = vector.broadcast %cst_54 : f32 to vector<8x192xf32>
    %188 = arith.addf %187, %186 : vector<8x192xf32>
    %189 = arith.divf %187, %188 : vector<8x192xf32>
    %190 = vector.extract_strided_slice %183 {offsets = [0, 192], sizes = [8, 64], strides = [1, 1]} : vector<8x256xf32> to vector<8x64xf32>
    %191 = math.tanh %190 : vector<8x64xf32>
    %192 = vector.extract_strided_slice %189 {offsets = [0, 0], sizes = [8, 64], strides = [1, 1]} : vector<8x192xf32> to vector<8x64xf32>
    %193 = vector.extract_strided_slice %189 {offsets = [0, 64], sizes = [8, 64], strides = [1, 1]} : vector<8x192xf32> to vector<8x64xf32>
    %194 = vector.extract_strided_slice %189 {offsets = [0, 128], sizes = [8, 64], strides = [1, 1]} : vector<8x192xf32> to vector<8x64xf32>
    %195 = arith.mulf %193, %174 : vector<8x64xf32>
    %196 = arith.mulf %192, %191 : vector<8x64xf32>
    %197 = arith.addf %195, %196 : vector<8x64xf32>
    %198 = math.tanh %197 : vector<8x64xf32>
    %199 = arith.mulf %194, %198 : vector<8x64xf32>
    %c7_i32_55 = arith.constant 7 : i32
    %200 = arith.subi %c7_i32_55, %c4_i32 : i32
    %201 = vector.broadcast %c4_i32 : i32 to vector<8x64xi32>
    %202 = vector.broadcast %200 : i32 to vector<8x64xi32>
    %203 = arith.select %6, %201, %202 : vector<8x64xi1>, vector<8x64xi32>
    %204 = arith.cmpi slt, %203, %3 : vector<8x64xi32>
    %cst_56 = arith.constant 0.000000e+00 : f32
    %205 = vector.broadcast %cst_56 : f32 to vector<8x64xf32>
    %206 = arith.select %204, %199, %205 : vector<8x64xi1>, vector<8x64xf32>
    %207 = vector.extract_strided_slice %206 {offsets = [0, 0], sizes = [8, 32], strides = [1, 1]} : vector<8x64xf32> to vector<8x32xf32>
    %208 = arith.index_cast %176 : i32 to index
    %c0_57 = arith.constant 0 : index
    %209 = vector.load %arg9[%208, %c0_57] : memref<64x64xf32, #tpu.memory_space<vmem>>, vector<8x32xf32>
    tpu.vector_store %arg9[%208, %c0_57], %207 {strides = array<i32>} : memref<64x64xf32, #tpu.memory_space<vmem>>, vector<8x32xf32>,
    %210 = vector.extract_strided_slice %206 {offsets = [0, 32], sizes = [8, 32], strides = [1, 1]} : vector<8x64xf32> to vector<8x32xf32>
    %211 = arith.index_cast %179 : i32 to index
    %c32_58 = arith.constant 32 : index
    %212 = vector.load %arg9[%211, %c32_58] : memref<64x64xf32, #tpu.memory_space<vmem>>, vector<8x32xf32>
    tpu.vector_store %arg9[%211, %c32_58], %210 {strides = array<i32>} : memref<64x64xf32, #tpu.memory_space<vmem>>, vector<8x32xf32>,
    %213 = arith.select %204, %199, %173 : vector<8x64xi1>, vector<8x64xf32>
    %214 = arith.select %204, %197, %174 : vector<8x64xi1>, vector<8x64xf32>
    %c5_i32 = arith.constant 5 : i32
    %c8_i32_59 = arith.constant 8 : i32
    %215 = arith.muli %c5_i32, %c8_i32_59 : i32
    %216 = tpu.assume_multiple %215, 8 : i32
    %c7_i32_60 = arith.constant 7 : i32
    %217 = arith.subi %c7_i32_60, %c5_i32 : i32
    %c8_i32_61 = arith.constant 8 : i32
    %218 = arith.muli %217, %c8_i32_61 : i32
    %219 = tpu.assume_multiple %218, 8 : i32
    %220 = arith.index_cast %216 : i32 to index
    %c0_62 = arith.constant 0 : index
    %221 = vector.load %arg8[%220, %c0_62] : memref<64x256xf32, #tpu.memory_space<vmem>>, vector<8x256xf32>
    %cst_63 = arith.constant dense<0.000000e+00> : vector<8x256xf32>
    %222 = tpu.matmul %213, %0, %cst_63 {dimension_numbers = #tpu.dot_dimension_numbers<[1], [0], [0], [1], [0, 0, 1, 1], [], []>} : vector<8x64xf32>, vector<64x256xf32>, vector<8x256xf32> -> vector<8x256xf32>
    %223 = arith.addf %221, %222 : vector<8x256xf32>
    %224 = vector.extract_strided_slice %223 {offsets = [0, 0], sizes = [8, 192], strides = [1, 1]} : vector<8x256xf32> to vector<8x192xf32>
    %225 = arith.negf %224 : vector<8x192xf32>
    %226 = math.exp %225 : vector<8x192xf32>
    %cst_64 = arith.constant 1.000000e+00 : f32
    %227 = vector.broadcast %cst_64 : f32 to vector<8x192xf32>
    %228 = arith.addf %227, %226 : vector<8x192xf32>
    %229 = arith.divf %227, %228 : vector<8x192xf32>
    %230 = vector.extract_strided_slice %223 {offsets = [0, 192], sizes = [8, 64], strides = [1, 1]} : vector<8x256xf32> to vector<8x64xf32>
    %231 = math.tanh %230 : vector<8x64xf32>
    %232 = vector.extract_strided_slice %229 {offsets = [0, 0], sizes = [8, 64], strides = [1, 1]} : vector<8x192xf32> to vector<8x64xf32>
    %233 = vector.extract_strided_slice %229 {offsets = [0, 64], sizes = [8, 64], strides = [1, 1]} : vector<8x192xf32> to vector<8x64xf32>
    %234 = vector.extract_strided_slice %229 {offsets = [0, 128], sizes = [8, 64], strides = [1, 1]} : vector<8x192xf32> to vector<8x64xf32>
    %235 = arith.mulf %233, %214 : vector<8x64xf32>
    %236 = arith.mulf %232, %231 : vector<8x64xf32>
    %237 = arith.addf %235, %236 : vector<8x64xf32>
    %238 = math.tanh %237 : vector<8x64xf32>
    %239 = arith.mulf %234, %238 : vector<8x64xf32>
    %c7_i32_65 = arith.constant 7 : i32
    %240 = arith.subi %c7_i32_65, %c5_i32 : i32
    %241 = vector.broadcast %c5_i32 : i32 to vector<8x64xi32>
    %242 = vector.broadcast %240 : i32 to vector<8x64xi32>
    %243 = arith.select %6, %241, %242 : vector<8x64xi1>, vector<8x64xi32>
    %244 = arith.cmpi slt, %243, %3 : vector<8x64xi32>
    %cst_66 = arith.constant 0.000000e+00 : f32
    %245 = vector.broadcast %cst_66 : f32 to vector<8x64xf32>
    %246 = arith.select %244, %239, %245 : vector<8x64xi1>, vector<8x64xf32>
    %247 = vector.extract_strided_slice %246 {offsets = [0, 0], sizes = [8, 32], strides = [1, 1]} : vector<8x64xf32> to vector<8x32xf32>
    %248 = arith.index_cast %216 : i32 to index
    %c0_67 = arith.constant 0 : index
    %249 = vector.load %arg9[%248, %c0_67] : memref<64x64xf32, #tpu.memory_space<vmem>>, vector<8x32xf32>
    tpu.vector_store %arg9[%248, %c0_67], %247 {strides = array<i32>} : memref<64x64xf32, #tpu.memory_space<vmem>>, vector<8x32xf32>,
    %250 = vector.extract_strided_slice %246 {offsets = [0, 32], sizes = [8, 32], strides = [1, 1]} : vector<8x64xf32> to vector<8x32xf32>
    %251 = arith.index_cast %219 : i32 to index
    %c32_68 = arith.constant 32 : index
    %252 = vector.load %arg9[%251, %c32_68] : memref<64x64xf32, #tpu.memory_space<vmem>>, vector<8x32xf32>
    tpu.vector_store %arg9[%251, %c32_68], %250 {strides = array<i32>} : memref<64x64xf32, #tpu.memory_space<vmem>>, vector<8x32xf32>,
    %253 = arith.select %244, %239, %213 : vector<8x64xi1>, vector<8x64xf32>
    %254 = arith.select %244, %237, %214 : vector<8x64xi1>, vector<8x64xf32>
    %c6_i32 = arith.constant 6 : i32
    %c8_i32_69 = arith.constant 8 : i32
    %255 = arith.muli %c6_i32, %c8_i32_69 : i32
    %256 = tpu.assume_multiple %255, 8 : i32
    %c7_i32_70 = arith.constant 7 : i32
    %257 = arith.subi %c7_i32_70, %c6_i32 : i32
    %c8_i32_71 = arith.constant 8 : i32
    %258 = arith.muli %257, %c8_i32_71 : i32
    %259 = tpu.assume_multiple %258, 8 : i32
    %260 = arith.index_cast %256 : i32 to index
    %c0_72 = arith.constant 0 : index
    %261 = vector.load %arg8[%260, %c0_72] : memref<64x256xf32, #tpu.memory_space<vmem>>, vector<8x256xf32>
    %cst_73 = arith.constant dense<0.000000e+00> : vector<8x256xf32>
    %262 = tpu.matmul %253, %0, %cst_73 {dimension_numbers = #tpu.dot_dimension_numbers<[1], [0], [0], [1], [0, 0, 1, 1], [], []>} : vector<8x64xf32>, vector<64x256xf32>, vector<8x256xf32> -> vector<8x256xf32>
    %263 = arith.addf %261, %262 : vector<8x256xf32>
    %264 = vector.extract_strided_slice %263 {offsets = [0, 0], sizes = [8, 192], strides = [1, 1]} : vector<8x256xf32> to vector<8x192xf32>
    %265 = arith.negf %264 : vector<8x192xf32>
    %266 = math.exp %265 : vector<8x192xf32>
    %cst_74 = arith.constant 1.000000e+00 : f32
    %267 = vector.broadcast %cst_74 : f32 to vector<8x192xf32>
    %268 = arith.addf %267, %266 : vector<8x192xf32>
    %269 = arith.divf %267, %268 : vector<8x192xf32>
    %270 = vector.extract_strided_slice %263 {offsets = [0, 192], sizes = [8, 64], strides = [1, 1]} : vector<8x256xf32> to vector<8x64xf32>
    %271 = math.tanh %270 : vector<8x64xf32>
    %272 = vector.extract_strided_slice %269 {offsets = [0, 0], sizes = [8, 64], strides = [1, 1]} : vector<8x192xf32> to vector<8x64xf32>
    %273 = vector.extract_strided_slice %269 {offsets = [0, 64], sizes = [8, 64], strides = [1, 1]} : vector<8x192xf32> to vector<8x64xf32>
    %274 = vector.extract_strided_slice %269 {offsets = [0, 128], sizes = [8, 64], strides = [1, 1]} : vector<8x192xf32> to vector<8x64xf32>
    %275 = arith.mulf %273, %254 : vector<8x64xf32>
    %276 = arith.mulf %272, %271 : vector<8x64xf32>
    %277 = arith.addf %275, %276 : vector<8x64xf32>
    %278 = math.tanh %277 : vector<8x64xf32>
    %279 = arith.mulf %274, %278 : vector<8x64xf32>
    %c7_i32_75 = arith.constant 7 : i32
    %280 = arith.subi %c7_i32_75, %c6_i32 : i32
    %281 = vector.broadcast %c6_i32 : i32 to vector<8x64xi32>
    %282 = vector.broadcast %280 : i32 to vector<8x64xi32>
    %283 = arith.select %6, %281, %282 : vector<8x64xi1>, vector<8x64xi32>
    %284 = arith.cmpi slt, %283, %3 : vector<8x64xi32>
    %cst_76 = arith.constant 0.000000e+00 : f32
    %285 = vector.broadcast %cst_76 : f32 to vector<8x64xf32>
    %286 = arith.select %284, %279, %285 : vector<8x64xi1>, vector<8x64xf32>
    %287 = vector.extract_strided_slice %286 {offsets = [0, 0], sizes = [8, 32], strides = [1, 1]} : vector<8x64xf32> to vector<8x32xf32>
    %288 = arith.index_cast %256 : i32 to index
    %c0_77 = arith.constant 0 : index
    %289 = vector.load %arg9[%288, %c0_77] : memref<64x64xf32, #tpu.memory_space<vmem>>, vector<8x32xf32>
    tpu.vector_store %arg9[%288, %c0_77], %287 {strides = array<i32>} : memref<64x64xf32, #tpu.memory_space<vmem>>, vector<8x32xf32>,
    %290 = vector.extract_strided_slice %286 {offsets = [0, 32], sizes = [8, 32], strides = [1, 1]} : vector<8x64xf32> to vector<8x32xf32>
    %291 = arith.index_cast %259 : i32 to index
    %c32_78 = arith.constant 32 : index
    %292 = vector.load %arg9[%291, %c32_78] : memref<64x64xf32, #tpu.memory_space<vmem>>, vector<8x32xf32>
    tpu.vector_store %arg9[%291, %c32_78], %290 {strides = array<i32>} : memref<64x64xf32, #tpu.memory_space<vmem>>, vector<8x32xf32>,
    %293 = arith.select %284, %279, %253 : vector<8x64xi1>, vector<8x64xf32>
    %294 = arith.select %284, %277, %254 : vector<8x64xi1>, vector<8x64xf32>
    %c7_i32_79 = arith.constant 7 : i32
    %c8_i32_80 = arith.constant 8 : i32
    %295 = arith.muli %c7_i32_79, %c8_i32_80 : i32
    %296 = tpu.assume_multiple %295, 8 : i32
    %c7_i32_81 = arith.constant 7 : i32
    %297 = arith.subi %c7_i32_81, %c7_i32_79 : i32
    %c8_i32_82 = arith.constant 8 : i32
    %298 = arith.muli %297, %c8_i32_82 : i32
    %299 = tpu.assume_multiple %298, 8 : i32
    %300 = arith.index_cast %296 : i32 to index
    %c0_83 = arith.constant 0 : index
    %301 = vector.load %arg8[%300, %c0_83] : memref<64x256xf32, #tpu.memory_space<vmem>>, vector<8x256xf32>
    %cst_84 = arith.constant dense<0.000000e+00> : vector<8x256xf32>
    %302 = tpu.matmul %293, %0, %cst_84 {dimension_numbers = #tpu.dot_dimension_numbers<[1], [0], [0], [1], [0, 0, 1, 1], [], []>} : vector<8x64xf32>, vector<64x256xf32>, vector<8x256xf32> -> vector<8x256xf32>
    %303 = arith.addf %301, %302 : vector<8x256xf32>
    %304 = vector.extract_strided_slice %303 {offsets = [0, 0], sizes = [8, 192], strides = [1, 1]} : vector<8x256xf32> to vector<8x192xf32>
    %305 = arith.negf %304 : vector<8x192xf32>
    %306 = math.exp %305 : vector<8x192xf32>
    %cst_85 = arith.constant 1.000000e+00 : f32
    %307 = vector.broadcast %cst_85 : f32 to vector<8x192xf32>
    %308 = arith.addf %307, %306 : vector<8x192xf32>
    %309 = arith.divf %307, %308 : vector<8x192xf32>
    %310 = vector.extract_strided_slice %303 {offsets = [0, 192], sizes = [8, 64], strides = [1, 1]} : vector<8x256xf32> to vector<8x64xf32>
    %311 = math.tanh %310 : vector<8x64xf32>
    %312 = vector.extract_strided_slice %309 {offsets = [0, 0], sizes = [8, 64], strides = [1, 1]} : vector<8x192xf32> to vector<8x64xf32>
    %313 = vector.extract_strided_slice %309 {offsets = [0, 64], sizes = [8, 64], strides = [1, 1]} : vector<8x192xf32> to vector<8x64xf32>
    %314 = vector.extract_strided_slice %309 {offsets = [0, 128], sizes = [8, 64], strides = [1, 1]} : vector<8x192xf32> to vector<8x64xf32>
    %315 = arith.mulf %313, %294 : vector<8x64xf32>
    %316 = arith.mulf %312, %311 : vector<8x64xf32>
    %317 = arith.addf %315, %316 : vector<8x64xf32>
    %318 = math.tanh %317 : vector<8x64xf32>
    %319 = arith.mulf %314, %318 : vector<8x64xf32>
    %c7_i32_86 = arith.constant 7 : i32
    %320 = arith.subi %c7_i32_86, %c7_i32_79 : i32
    %321 = vector.broadcast %c7_i32_79 : i32 to vector<8x64xi32>
    %322 = vector.broadcast %320 : i32 to vector<8x64xi32>
    %323 = arith.select %6, %321, %322 : vector<8x64xi1>, vector<8x64xi32>
    %324 = arith.cmpi slt, %323, %3 : vector<8x64xi32>
    %cst_87 = arith.constant 0.000000e+00 : f32
    %325 = vector.broadcast %cst_87 : f32 to vector<8x64xf32>
    %326 = arith.select %324, %319, %325 : vector<8x64xi1>, vector<8x64xf32>
    %327 = vector.extract_strided_slice %326 {offsets = [0, 0], sizes = [8, 32], strides = [1, 1]} : vector<8x64xf32> to vector<8x32xf32>
    %328 = arith.index_cast %296 : i32 to index
    %c0_88 = arith.constant 0 : index
    %329 = vector.load %arg9[%328, %c0_88] : memref<64x64xf32, #tpu.memory_space<vmem>>, vector<8x32xf32>
    tpu.vector_store %arg9[%328, %c0_88], %327 {strides = array<i32>} : memref<64x64xf32, #tpu.memory_space<vmem>>, vector<8x32xf32>,
    %330 = vector.extract_strided_slice %326 {offsets = [0, 32], sizes = [8, 32], strides = [1, 1]} : vector<8x64xf32> to vector<8x32xf32>
    %331 = arith.index_cast %299 : i32 to index
    %c32_89 = arith.constant 32 : index
    %332 = vector.load %arg9[%331, %c32_89] : memref<64x64xf32, #tpu.memory_space<vmem>>, vector<8x32xf32>
    tpu.vector_store %arg9[%331, %c32_89], %330 {strides = array<i32>} : memref<64x64xf32, #tpu.memory_space<vmem>>, vector<8x32xf32>,
    %333 = arith.select %324, %319, %293 : vector<8x64xi1>, vector<8x64xf32>
    %334 = arith.select %324, %317, %294 : vector<8x64xi1>, vector<8x64xf32>
    %c8_i32_90 = arith.constant 8 : i32
    %c0_91 = arith.constant 0 : index
    %c0_92 = arith.constant 0 : index
    %335 = vector.load %arg9[%c0_91, %c0_92] : memref<64x64xf32, #tpu.memory_space<vmem>>, vector<64x64xf32>
    %c0_93 = arith.constant 0 : index
    %c0_94 = arith.constant 0 : index
    %336 = vector.load %arg5[%c0_93, %c0_94] : memref<64x128xf32, #tpu.memory_space<vmem>>, vector<64x128xf32>
    %cst_95 = arith.constant dense<0.000000e+00> : vector<64x128xf32>
    %337 = tpu.matmul %335, %336, %cst_95 {dimension_numbers = #tpu.dot_dimension_numbers<[1], [0], [0], [1], [0, 0, 1, 1], [], []>} : vector<64x64xf32>, vector<64x128xf32>, vector<64x128xf32> -> vector<64x128xf32>
    %c0_96 = arith.constant 0 : index
    %c0_97 = arith.constant 0 : index
    %338 = vector.load %arg6[%c0_96, %c0_97] : memref<1x128xf32, #tpu.memory_space<vmem>>, vector<1x128xf32>
    %339 = vector.broadcast %338 : vector<1x128xf32> to vector<64x128xf32>
    %340 = arith.addf %337, %339 : vector<64x128xf32>
    %c0_98 = arith.constant 0 : index
    %c0_99 = arith.constant 0 : index
    %341 = vector.load %arg7[%c0_98, %c0_99] : memref<64x128xf32, #tpu.memory_space<vmem>>, vector<64x128xf32>
    tpu.vector_store %arg7[%c0_98, %c0_99], %340 {strides = array<i32>} : memref<64x128xf32, #tpu.memory_space<vmem>>, vector<64x128xf32>,
    return
  }
}

</mosaic_0001>

<llo_original>
// kernel: stroke_ctc_forward.1
$region0: #{stroke_ctc_forward.1}
  #allocation0 [shape = 'u32[]', space=smem, size = 0x4, offset = 0x4, fixed_abs, tag = 'smem constant byte address 0x4 - core index']
  #allocation1 [shape = 'u32[72,128]{1,0:T(1,128)}', space=vmem, size = 0x9000, scoped, tag = 'internal scratch']
  #allocation2 [shape = 'f32[64,256]{1,0:T(8,128)}', space=vmem, size = 0x10000, scoped, tag = 'scratch operand']
  #allocation3 [shape = 'f32[64,64]{1,0:T(8,128)}', space=vmem, size = 0x8000, scoped, tag = 'scratch operand']
  %s0 = inlined_call_operand.vmem [shape: f32[64,16], index: 0, kind: input, shape index: {}]
  %s1 = inlined_call_operand.vmem [shape: s32[8,1], index: 1, kind: input, shape index: {}]
  %s2 = inlined_call_operand.vmem [shape: f32[16,256], index: 2, kind: input, shape index: {}]
  %s3 = inlined_call_operand.vmem [shape: f32[64,256], index: 3, kind: input, shape index: {}]
  %s4 = inlined_call_operand.vmem [shape: f32[1,256], index: 4, kind: input, shape index: {}]
  %s5 = inlined_call_operand.vmem [shape: f32[64,128], index: 5, kind: input, shape index: {}]
  %s6 = inlined_call_operand.vmem [shape: f32[1,128], index: 6, kind: input, shape index: {}]
  %s7 = inlined_call_operand.vmem [shape: f32[64,128], index: 7, kind: output, shape index: {}]
  %s8 = sld [smem:[#allocation0]]
  $region38: #{stroke_ctc_forward.1} parent=0
    _
  %s10 = ssub.s32 1, %s8
  %s11 = scalar_select 0, %s10, %s8
  // Predicated region
  $region2: #{stroke_ctc_forward.1} parent=0 // pred_check
    _
  $region3: #{stroke_ctc_forward.1} parent=0 // pred_check_branch
    %13 = sbr.rel (0) target = $region5
  $region4: #{stroke_ctc_forward.1} parent=0 // pred_region
    _
  $region5: #{stroke_ctc_forward.1} parent=0 // pred_fallthru
    _
  // Predicated region
  $region6: #{stroke_ctc_forward.1} parent=0 // pred_check
    _
  $region7: #{stroke_ctc_forward.1} parent=0 // pred_check_branch
    %15 = sbr.rel (0) target = $region9
  $region8: #{stroke_ctc_forward.1} parent=0 // pred_region
    _
  $region9: #{stroke_ctc_forward.1} parent=0 // pred_fallthru
    _
  // Predicated region
  $region10: #{stroke_ctc_forward.1} parent=0 // pred_check
    _
  $region11: #{stroke_ctc_forward.1} parent=0 // pred_check_branch
    %17 = sbr.rel (0) target = $region13
  $region12: #{stroke_ctc_forward.1} parent=0 // pred_region
    _
  $region13: #{stroke_ctc_forward.1} parent=0 // pred_fallthru
    _
  // Predicated region
  $region14: #{stroke_ctc_forward.1} parent=0 // pred_check
    _
  $region15: #{stroke_ctc_forward.1} parent=0 // pred_check_branch
    %19 = sbr.rel (0) target = $region17
  $region16: #{stroke_ctc_forward.1} parent=0 // pred_region
    _
  $region17: #{stroke_ctc_forward.1} parent=0 // pred_fallthru
    _
  // Predicated region
  $region18: #{stroke_ctc_forward.1} parent=0 // pred_check
    _
  $region19: #{stroke_ctc_forward.1} parent=0 // pred_check_branch
    %21 = sbr.rel (0) target = $region21
  $region20: #{stroke_ctc_forward.1} parent=0 // pred_region
    _
  $region21: #{stroke_ctc_forward.1} parent=0 // pred_fallthru
    _
  // Predicated region
  $region22: #{stroke_ctc_forward.1} parent=0 // pred_check
    _
  $region23: #{stroke_ctc_forward.1} parent=0 // pred_check_branch
    %23 = sbr.rel (0) target = $region25
  $region24: #{stroke_ctc_forward.1} parent=0 // pred_region
    _
  $region25: #{stroke_ctc_forward.1} parent=0 // pred_fallthru
    _
  // Predicated region
  $region26: #{stroke_ctc_forward.1} parent=0 // pred_check
    _
  $region27: #{stroke_ctc_forward.1} parent=0 // pred_check_branch
    %25 = sbr.rel (0) target = $region29
  $region28: #{stroke_ctc_forward.1} parent=0 // pred_region
    _
  $region29: #{stroke_ctc_forward.1} parent=0 // pred_fallthru
    _
  %v26 = vld [vmem:[%s3] sm:$0xff]
  %v27 = vld [vmem:[%s3 + $0x8] sm:$0xff]
  %v28 = vld [vmem:[%s3 + $0x10] sm:$0xff]
  %v29 = vld [vmem:[%s3 + $0x18] sm:$0xff]
  %v30 = vld [vmem:[%s3 + $0x20] sm:$0xff]
  %v31 = vld [vmem:[%s3 + $0x28] sm:$0xff]
  %v32 = vld [vmem:[%s3 + $0x30] sm:$0xff]
  %v33 = vld [vmem:[%s3 + $0x38] sm:$0xff]
  %v34 = vld [vmem:[%s3 + $0x40] sm:$0xff]
  %v35 = vld [vmem:[%s3 + $0x48] sm:$0xff]
  %v36 = vld [vmem:[%s3 + $0x50] sm:$0xff]
  %v37 = vld [vmem:[%s3 + $0x58] sm:$0xff]
  %v38 = vld [vmem:[%s3 + $0x60] sm:$0xff]
  %v39 = vld [vmem:[%s3 + $0x68] sm:$0xff]
  %v40 = vld [vmem:[%s3 + $0x70] sm:$0xff]
  %v41 = vld [vmem:[%s3 + $0x78] sm:$0xff]
  %v42 = vld [vmem:[%s1] sm:$0xff]
  %43 = vset.pattern.permute.xlu0 0
  %44 = vperm.xlu0 %43, %v42
  %v45 = vpop.permute.xlu0 %44
  %v46 = vlaneseq
  %v47 = vand.u32 %v46, 127
  %vm48 = vcmp.lt.s32.totalorder %v47, 32
  %v49 = vld [vmem:[%s0] sm:$0xff]
  %v50 = vld [vmem:[%s0 + $0x8] sm:$0xff]
  %v51 = vld [vmem:[%s0 + $0x10] sm:$0xff]
  %v52 = vld [vmem:[%s0 + $0x18] sm:$0xff]
  %v53 = vld [vmem:[%s0 + $0x20] sm:$0xff]
  %v54 = vld [vmem:[%s0 + $0x28] sm:$0xff]
  %v55 = vld [vmem:[%s0 + $0x30] sm:$0xff]
  %v56 = vld [vmem:[%s0 + $0x38] sm:$0xff]
  %v57 = vld [vmem:[%s2] sm:$0xff]
  %v58 = vld [vmem:[%s2 + $0x8] sm:$0xff]
  %v59 = vld [vmem:[%s2 + $0x10] sm:$0xff]
  %v60 = vld [vmem:[%s2 + $0x18] sm:$0xff]
  %v61 = vld [vmem:[%s4] sm:$0x3]
  %v63 = vperm.slane %v61, 0
  %v64 = vperm.slane %v61, 1
  %vm67 = vcmask 130048
  %v69 = vsel %vm67, %v49, 0
  %v72 = vsel %vm67, %v50, 0
  %v75 = vsel %vm67, %v51, 0
  %v78 = vsel %vm67, %v52, 0
  %v81 = vsel %vm67, %v53, 0
  %v84 = vsel %vm67, %v54, 0
  %v87 = vsel %vm67, %v55, 0
  %v90 = vsel %vm67, %v56, 0
  %92 = vmatpush.msra.mxu0 0.0
  %93 = vmatpush.msra.mxu0 0.0
  %94 = vmatpush.msra.mxu0 0.0
  %95 = vmatpush.msra.mxu0 0.0
  %96 = vmatpush.msra.mxu0 0.0
  %97 = vmatpush.msra.mxu0 0.0
  %98 = vmatpush.msra.mxu0 0.0
  %99 = vmatpush.msra.mxu0 0.0
  %100 = vmatpush.msra.mxu0 0.0
  %101 = vmatpush.msra.mxu0 0.0
  %102 = vmatpush.msra.mxu0 0.0
  %103 = vmatpush.msra.mxu0 0.0
  %104 = vmatpush.msra.mxu0 0.0
  %105 = vmatpush.msra.mxu0 0.0
  %106 = vmatpush.msra.mxu0 %v59
  %107 = vmatpush.msra.mxu0 %v57
  %108 = vmatmul.f32.gmra.mxu0 %v69
  %v109 = vpop.f32.mrf.mxu0
  %v110 = vadd.f32 %v63, %v109
  %111 = vmatmul.f32.gmra.mxu0 %v72
  %v112 = vpop.f32.mrf.mxu0
  %v113 = vadd.f32 %v63, %v112
  %114 = vmatmul.f32.gmra.mxu0 %v75
  %v115 = vpop.f32.mrf.mxu0
  %v116 = vadd.f32 %v63, %v115
  %117 = vmatmul.f32.gmra.mxu0 %v78
  %v118 = vpop.f32.mrf.mxu0
  %v119 = vadd.f32 %v63, %v118
  %120 = vmatmul.f32.gmra.mxu0 %v81
  %v121 = vpop.f32.mrf.mxu0
  %v122 = vadd.f32 %v63, %v121
  %123 = vmatmul.f32.gmra.mxu0 %v84
  %v124 = vpop.f32.mrf.mxu0
  %v125 = vadd.f32 %v63, %v124
  %126 = vmatmul.f32.gmra.mxu0 %v87
  %v127 = vpop.f32.mrf.mxu0
  %v128 = vadd.f32 %v63, %v127
  %129 = vmatmul.f32.gmra.mxu0 %v90
  %v130 = vpop.f32.mrf.mxu0
  %v131 = vadd.f32 %v63, %v130
  %132 = vdwg.mxu0
  %133 = vmatpush.msra.mxu0 0.0
  %134 = vmatpush.msra.mxu0 0.0
  %135 = vmatpush.msra.mxu0 0.0
  %136 = vmatpush.msra.mxu0 0.0
  %137 = vmatpush.msra.mxu0 0.0
  %138 = vmatpush.msra.mxu0 0.0
  %139 = vmatpush.msra.mxu0 0.0
  %140 = vmatpush.msra.mxu0 0.0
  %141 = vmatpush.msra.mxu0 0.0
  %142 = vmatpush.msra.mxu0 0.0
  %143 = vmatpush.msra.mxu0 0.0
  %144 = vmatpush.msra.mxu0 0.0
  %145 = vmatpush.msra.mxu0 0.0
  %146 = vmatpush.msra.mxu0 0.0
  %147 = vmatpush.msra.mxu0 %v60
  %148 = vmatpush.msra.mxu0 %v58
  %149 = vmatmul.f32.gmra.mxu0 %v69
  %v150 = vpop.f32.mrf.mxu0
  %v151 = vadd.f32 %v64, %v150
  %152 = vmatmul.f32.gmra.mxu0 %v72
  %v153 = vpop.f32.mrf.mxu0
  %v154 = vadd.f32 %v64, %v153
  %155 = vmatmul.f32.gmra.mxu0 %v75
  %v156 = vpop.f32.mrf.mxu0
  %v157 = vadd.f32 %v64, %v156
  %158 = vmatmul.f32.gmra.mxu0 %v78
  %v159 = vpop.f32.mrf.mxu0
  %v160 = vadd.f32 %v64, %v159
  %161 = vmatmul.f32.gmra.mxu0 %v81
  %v162 = vpop.f32.mrf.mxu0
  %v163 = vadd.f32 %v64, %v162
  %164 = vmatmul.f32.gmra.mxu0 %v84
  %v165 = vpop.f32.mrf.mxu0
  %v166 = vadd.f32 %v64, %v165
  %167 = vmatmul.f32.gmra.mxu0 %v87
  %v168 = vpop.f32.mrf.mxu0
  %v169 = vadd.f32 %v64, %v168
  %170 = vmatmul.f32.gmra.mxu0 %v90
  %v171 = vpop.f32.mrf.mxu0
  %v172 = vadd.f32 %v64, %v171
  %173 = vdwg.mxu0
  %174 = vst [vmem:[#allocation2] sm:$0xff] %v110
  %175 = vst [vmem:[#allocation2 + $0x8] sm:$0xff] %v151
  %176 = vst [vmem:[#allocation2 + $0x10] sm:$0xff] %v113
  %177 = vst [vmem:[#allocation2 + $0x18] sm:$0xff] %v154
  %178 = vst [vmem:[#allocation2 + $0x20] sm:$0xff] %v116
  %179 = vst [vmem:[#allocation2 + $0x28] sm:$0xff] %v157
  %180 = vst [vmem:[#allocation2 + $0x30] sm:$0xff] %v119
  %181 = vst [vmem:[#allocation2 + $0x38] sm:$0xff] %v160
  %182 = vst [vmem:[#allocation2 + $0x40] sm:$0xff] %v122
  %183 = vst [vmem:[#allocation2 + $0x48] sm:$0xff] %v163
  %184 = vst [vmem:[#allocation2 + $0x50] sm:$0xff] %v125
  %185 = vst [vmem:[#allocation2 + $0x58] sm:$0xff] %v166
  %186 = vst [vmem:[#allocation2 + $0x60] sm:$0xff] %v128
  %187 = vst [vmem:[#allocation2 + $0x68] sm:$0xff] %v169
  %188 = vst [vmem:[#allocation2 + $0x70] sm:$0xff] %v131
  %189 = vst [vmem:[#allocation2 + $0x78] sm:$0xff] %v172
  %s190 = smul.u32 0, 2
  %s191 = smul.addr %s190, 8
  %s192 = scalar_lea.vmem [#allocation2], %s191
  %v193 = vld [vmem:[%s192] sm:$0xff]
  %v194 = vld [vmem:[%s192 + $0x8] sm:$0xff]
  %vm195 = vcmask 523264
  %v197 = vsel %vm195, 0.0, 0
  %199 = vmatpush.msra.mxu0 0.0
  %200 = vmatpush.msra.mxu0 0.0
  %201 = vmatpush.msra.mxu0 0.0
  %202 = vmatpush.msra.mxu0 0.0
  %203 = vmatpush.msra.mxu0 0.0
  %204 = vmatpush.msra.mxu0 0.0
  %205 = vmatpush.msra.mxu0 0.0
  %206 = vmatpush.msra.mxu0 0.0
  %207 = vmatpush.msra.mxu0 %v40
  %208 = vmatpush.msra.mxu0 %v38
  %209 = vmatpush.msra.mxu0 %v36
  %210 = vmatpush.msra.mxu0 %v34
  %211 = vmatpush.msra.mxu0 %v32
  %212 = vmatpush.msra.mxu0 %v30
  %213 = vmatpush.msra.mxu0 %v28
  %214 = vmatpush.msra.mxu0 %v26
  %215 = vmatmul.f32.gmra.mxu0 %v197
  %v216 = vpop.f32.mrf.mxu0
  %v217 = vadd.f32 0.0, %v216
  %218 = vdwg.mxu0
  %219 = vmatpush.msra.mxu0 0.0
  %220 = vmatpush.msra.mxu0 0.0
  %221 = vmatpush.msra.mxu0 0.0
  %222 = vmatpush.msra.mxu0 0.0
  %223 = vmatpush.msra.mxu0 0.0
  %224 = vmatpush.msra.mxu0 0.0
  %225 = vmatpush.msra.mxu0 0.0
  %226 = vmatpush.msra.mxu0 0.0
  %227 = vmatpush.msra.mxu0 %v41
  %228 = vmatpush.msra.mxu0 %v39
  %229 = vmatpush.msra.mxu0 %v37
  %230 = vmatpush.msra.mxu0 %v35
  %231 = vmatpush.msra.mxu0 %v33
  %232 = vmatpush.msra.mxu0 %v31
  %233 = vmatpush.msra.mxu0 %v29
  %234 = vmatpush.msra.mxu0 %v27
  %235 = vmatmul.f32.gmra.mxu0 %v197
  %v236 = vpop.f32.mrf.mxu0
  %v237 = vadd.f32 0.0, %v236
  %238 = vdwg.mxu0
  %v239 = vadd.f32 %v193, %v217
  %v240 = vadd.f32 %v194, %v237
  %v241 = vxor.u32 %v239, 2147483648
  %v242 = vxor.u32 %v240, 2147483648
  %v243 = vmul.f32 %v241, 1.442695
  %v244 = vpow.pop %v243
  %v245 = vmul.f32 %v242, 1.442695
  %v246 = vpow.pop %v245
  %v247 = vadd.f32 %v244, 1.0
  %v248 = vadd.f32 %v246, 1.0
  %v249 = vrcp.pop %v247
  %v250 = vmul.f32 %v247, %v249
  %v251 = vsub.f32 1.0, %v250
  %v252 = vmul.f32 %v249, %v251
  %v253 = vadd.f32 %v249, %v252
  %vm254 = vweird.f32 %v247
  %vm255 = vweird.f32 %v249
  %vm256 = vmor %vm254, %vm255
  %v257 = vsel %vm256, %v249, %v253
  %v258 = vand.u32 2147483647, %v247
  %vm259 = vcmp.eq.f32.partialorder %v258, 8.507059e+37
  %v260 = vand.u32 %v247, 2147483648
  %v261 = vor.u32 1.1754944e-38, %v260
  %v262 = vsel %vm259, %v261, %v257
  %v263 = vmul.f32 1.0, %v262
  %v264 = vrcp.pop %v248
  %v265 = vmul.f32 %v248, %v264
  %v266 = vsub.f32 1.0, %v265
  %v267 = vmul.f32 %v264, %v266
  %v268 = vadd.f32 %v264, %v267
  %vm269 = vweird.f32 %v248
  %vm270 = vweird.f32 %v264
  %vm271 = vmor %vm269, %vm270
  %v272 = vsel %vm271, %v264, %v268
  %v273 = vand.u32 2147483647, %v248
  %vm274 = vcmp.eq.f32.partialorder %v273, 8.507059e+37
  %v275 = vand.u32 %v248, 2147483648
  %v276 = vor.u32 1.1754944e-38, %v275
  %v277 = vsel %vm274, %v276, %v272
  %v278 = vmul.f32 1.0, %v277
  %v279 = vtanh.pop %v240
  %v280 = vmul.f32 %v263, 0.0
  %282 = vrot.lane.b32.xlu0 %v279, 64
  %v283 = vpop.permute.xlu0 %282
  %v285 = vmul.f32 %v263, %v283
  %287 = vrot.lane.b32.xlu0 %v285, 64
  %v288 = vpop.permute.xlu0 %287
  %v290 = vadd.f32 %v280, %v288
  %v291 = vtanh.pop %v290
  %293 = vrot.lane.b32.xlu0 %v291, 64
  %v294 = vpop.permute.xlu0 %293
  %v296 = vmul.f32 %v278, %v294
  %v297 = vsel %vm48, 0, 7
  %vm298 = vcmp.lt.s32.totalorder %v297, %v45
  %v299 = vsel %vm298, %v296, 0.0
  %vm300 = vcmask 261120
  %301 = vst.msk [vmem:[#allocation3] sm:$0xff] %vm300, %v299
  %s302 = scalar_lea.vmem [#allocation3], 56
  %vm303 = vcmask 523520
  %304 = vst.msk [vmem:[%s302] sm:$0xff] %vm303, %v299
  %306 = vrot.lane.b32.xlu0 %v290, 64
  %v307 = vpop.permute.xlu0 %306
  %v309 = vsel %vm298, %v307, 0.0
  %s310 = smul.u32 1, 2
  %s311 = smul.addr %s310, 8
  %s312 = scalar_lea.vmem [#allocation2], %s311
  %v313 = vld [vmem:[%s312] sm:$0xff]
  %v314 = vld [vmem:[%s312 + $0x8] sm:$0xff]
  %v316 = vsel %vm195, %v299, 0
  %318 = vmatpush.msra.mxu0 0.0
  %319 = vmatpush.msra.mxu0 0.0
  %320 = vmatpush.msra.mxu0 0.0
  %321 = vmatpush.msra.mxu0 0.0
  %322 = vmatpush.msra.mxu0 0.0
  %323 = vmatpush.msra.mxu0 0.0
  %324 = vmatpush.msra.mxu0 0.0
  %325 = vmatpush.msra.mxu0 0.0
  %326 = vmatpush.msra.mxu0 %v40
  %327 = vmatpush.msra.mxu0 %v38
  %328 = vmatpush.msra.mxu0 %v36
  %329 = vmatpush.msra.mxu0 %v34
  %330 = vmatpush.msra.mxu0 %v32
  %331 = vmatpush.msra.mxu0 %v30
  %332 = vmatpush.msra.mxu0 %v28
  %333 = vmatpush.msra.mxu0 %v26
  %334 = vmatmul.f32.gmra.mxu0 %v316
  %v335 = vpop.f32.mrf.mxu0
  %v336 = vadd.f32 0.0, %v335
  %337 = vdwg.mxu0
  %338 = vmatpush.msra.mxu0 0.0
  %339 = vmatpush.msra.mxu0 0.0
  %340 = vmatpush.msra.mxu0 0.0
  %341 = vmatpush.msra.mxu0 0.0
  %342 = vmatpush.msra.mxu0 0.0
  %343 = vmatpush.msra.mxu0 0.0
  %344 = vmatpush.msra.mxu0 0.0
  %345 = vmatpush.msra.mxu0 0.0
  %346 = vmatpush.msra.mxu0 %v41
  %347 = vmatpush.msra.mxu0 %v39
  %348 = vmatpush.msra.mxu0 %v37
  %349 = vmatpush.msra.mxu0 %v35
  %350 = vmatpush.msra.mxu0 %v33
  %351 = vmatpush.msra.mxu0 %v31
  %352 = vmatpush.msra.mxu0 %v29
  %353 = vmatpush.msra.mxu0 %v27
  %354 = vmatmul.f32.gmra.mxu0 %v316
  %v355 = vpop.f32.mrf.mxu0
  %v356 = vadd.f32 0.0, %v355
  %357 = vdwg.mxu0
  %v358 = vadd.f32 %v313, %v336
  %v359 = vadd.f32 %v314, %v356
  %v360 = vxor.u32 %v358, 2147483648
  %v361 = vxor.u32 %v359, 2147483648
  %v362 = vmul.f32 %v360, 1.442695
  %v363 = vpow.pop %v362
  %v364 = vmul.f32 %v361, 1.442695
  %v365 = vpow.pop %v364
  %v366 = vadd.f32 %v363, 1.0
  %v367 = vadd.f32 %v365, 1.0
  %v368 = vrcp.pop %v366
  %v369 = vmul.f32 %v366, %v368
  %v370 = vsub.f32 1.0, %v369
  %v371 = vmul.f32 %v368, %v370
  %v372 = vadd.f32 %v368, %v371
  %vm373 = vweird.f32 %v366
  %vm374 = vweird.f32 %v368
  %vm375 = vmor %vm373, %vm374
  %v376 = vsel %vm375, %v368, %v372
  %v377 = vand.u32 2147483647, %v366
  %vm378 = vcmp.eq.f32.partialorder %v377, 8.507059e+37
  %v379 = vand.u32 %v366, 2147483648
  %v380 = vor.u32 1.1754944e-38, %v379
  %v381 = vsel %vm378, %v380, %v376
  %v382 = vmul.f32 1.0, %v381
  %v383 = vrcp.pop %v367
  %v384 = vmul.f32 %v367, %v383
  %v385 = vsub.f32 1.0, %v384
  %v386 = vmul.f32 %v383, %v385
  %v387 = vadd.f32 %v383, %v386
  %vm388 = vweird.f32 %v367
  %vm389 = vweird.f32 %v383
  %vm390 = vmor %vm388, %vm389
  %v391 = vsel %vm390, %v383, %v387
  %v392 = vand.u32 2147483647, %v367
  %vm393 = vcmp.eq.f32.partialorder %v392, 8.507059e+37
  %v394 = vand.u32 %v367, 2147483648
  %v395 = vor.u32 1.1754944e-38, %v394
  %v396 = vsel %vm393, %v395, %v391
  %v397 = vmul.f32 1.0, %v396
  %v398 = vtanh.pop %v359
  %400 = vrot.lane.b32.xlu0 %v309, 64
  %v401 = vpop.permute.xlu0 %400
  %v403 = vmul.f32 %v382, %v401
  %405 = vrot.lane.b32.xlu0 %v398, 64
  %v406 = vpop.permute.xlu0 %405
  %v408 = vmul.f32 %v382, %v406
  %410 = vrot.lane.b32.xlu0 %v408, 64
  %v411 = vpop.permute.xlu0 %410
  %v413 = vadd.f32 %v403, %v411
  %v414 = vtanh.pop %v413
  %416 = vrot.lane.b32.xlu0 %v414, 64
  %v417 = vpop.permute.xlu0 %416
  %v419 = vmul.f32 %v397, %v417
  %v420 = vsel %vm48, 1, 6
  %vm421 = vcmp.lt.s32.totalorder %v420, %v45
  %v422 = vsel %vm421, %v419, 0.0
  %s423 = scalar_lea.vmem [#allocation3], 8
  %424 = vst.msk [vmem:[%s423] sm:$0xff] %vm300, %v422
  %s425 = scalar_lea.vmem [#allocation3], 48
  %426 = vst.msk [vmem:[%s425] sm:$0xff] %vm303, %v422
  %v427 = vsel %vm421, %v419, %v299
  %429 = vrot.lane.b32.xlu0 %v413, 64
  %v430 = vpop.permute.xlu0 %429
  %v432 = vsel %vm421, %v430, %v309
  %s433 = smul.u32 2, 2
  %s434 = smul.addr %s433, 8
  %s435 = scalar_lea.vmem [#allocation2], %s434
  %v436 = vld [vmem:[%s435] sm:$0xff]
  %v437 = vld [vmem:[%s435 + $0x8] sm:$0xff]
  %v439 = vsel %vm195, %v427, 0
  %441 = vmatpush.msra.mxu0 0.0
  %442 = vmatpush.msra.mxu0 0.0
  %443 = vmatpush.msra.mxu0 0.0
  %444 = vmatpush.msra.mxu0 0.0
  %445 = vmatpush.msra.mxu0 0.0
  %446 = vmatpush.msra.mxu0 0.0
  %447 = vmatpush.msra.mxu0 0.0
  %448 = vmatpush.msra.mxu0 0.0
  %449 = vmatpush.msra.mxu0 %v40
  %450 = vmatpush.msra.mxu0 %v38
  %451 = vmatpush.msra.mxu0 %v36
  %452 = vmatpush.msra.mxu0 %v34
  %453 = vmatpush.msra.mxu0 %v32
  %454 = vmatpush.msra.mxu0 %v30
  %455 = vmatpush.msra.mxu0 %v28
  %456 = vmatpush.msra.mxu0 %v26
  %457 = vmatmul.f32.gmra.mxu0 %v439
  %v458 = vpop.f32.mrf.mxu0
  %v459 = vadd.f32 0.0, %v458
  %460 = vdwg.mxu0
  %461 = vmatpush.msra.mxu0 0.0
  %462 = vmatpush.msra.mxu0 0.0
  %463 = vmatpush.msra.mxu0 0.0
  %464 = vmatpush.msra.mxu0 0.0
  %465 = vmatpush.msra.mxu0 0.0
  %466 = vmatpush.msra.mxu0 0.0
  %467 = vmatpush.msra.mxu0 0.0
  %468 = vmatpush.msra.mxu0 0.0
  %469 = vmatpush.msra.mxu0 %v41
  %470 = vmatpush.msra.mxu0 %v39
  %471 = vmatpush.msra.mxu0 %v37
  %472 = vmatpush.msra.mxu0 %v35
  %473 = vmatpush.msra.mxu0 %v33
  %474 = vmatpush.msra.mxu0 %v31
  %475 = vmatpush.msra.mxu0 %v29
  %476 = vmatpush.msra.mxu0 %v27
  %477 = vmatmul.f32.gmra.mxu0 %v439
  %v478 = vpop.f32.mrf.mxu0
  %v479 = vadd.f32 0.0, %v478
  %480 = vdwg.mxu0
  %v481 = vadd.f32 %v436, %v459
  %v482 = vadd.f32 %v437, %v479
  %v483 = vxor.u32 %v481, 2147483648
  %v484 = vxor.u32 %v482, 2147483648
  %v485 = vmul.f32 %v483, 1.442695
  %v486 = vpow.pop %v485
  %v487 = vmul.f32 %v484, 1.442695
  %v488 = vpow.pop %v487
  %v489 = vadd.f32 %v486, 1.0
  %v490 = vadd.f32 %v488, 1.0
  %v491 = vrcp.pop %v489
  %v492 = vmul.f32 %v489, %v491
  %v493 = vsub.f32 1.0, %v492
  %v494 = vmul.f32 %v491, %v493
  %v495 = vadd.f32 %v491, %v494
  %vm496 = vweird.f32 %v489
  %vm497 = vweird.f32 %v491
  %vm498 = vmor %vm496, %vm497
  %v499 = vsel %vm498, %v491, %v495
  %v500 = vand.u32 2147483647, %v489
  %vm501 = vcmp.eq.f32.partialorder %v500, 8.507059e+37
  %v502 = vand.u32 %v489, 2147483648
  %v503 = vor.u32 1.1754944e-38, %v502
  %v504 = vsel %vm501, %v503, %v499
  %v505 = vmul.f32 1.0, %v504
  %v506 = vrcp.pop %v490
  %v507 = vmul.f32 %v490, %v506
  %v508 = vsub.f32 1.0, %v507
  %v509 = vmul.f32 %v506, %v508
  %v510 = vadd.f32 %v506, %v509
  %vm511 = vweird.f32 %v490
  %vm512 = vweird.f32 %v506
  %vm513 = vmor %vm511, %vm512
  %v514 = vsel %vm513, %v506, %v510
  %v515 = vand.u32 2147483647, %v490
  %vm516 = vcmp.eq.f32.partialorder %v515, 8.507059e+37
  %v517 = vand.u32 %v490, 2147483648
  %v518 = vor.u32 1.1754944e-38, %v517
  %v519 = vsel %vm516, %v518, %v514
  %v520 = vmul.f32 1.0, %v519
  %v521 = vtanh.pop %v482
  %523 = vrot.lane.b32.xlu0 %v432, 64
  %v524 = vpop.permute.xlu0 %523
  %v526 = vmul.f32 %v505, %v524
  %528 = vrot.lane.b32.xlu0 %v521, 64
  %v529 = vpop.permute.xlu0 %528
  %v531 = vmul.f32 %v505, %v529
  %533 = vrot.lane.b32.xlu0 %v531, 64
  %v534 = vpop.permute.xlu0 %533
  %v536 = vadd.f32 %v526, %v534
  %v537 = vtanh.pop %v536
  %539 = vrot.lane.b32.xlu0 %v537, 64
  %v540 = vpop.permute.xlu0 %539
  %v542 = vmul.f32 %v520, %v540
  %v543 = vsel %vm48, 2, 5
  %vm544 = vcmp.lt.s32.totalorder %v543, %v45
  %v545 = vsel %vm544, %v542, 0.0
  %s546 = scalar_lea.vmem [#allocation3], 16
  %547 = vst.msk [vmem:[%s546] sm:$0xff] %vm300, %v545
  %s548 = scalar_lea.vmem [#allocation3], 40
  %549 = vst.msk [vmem:[%s548] sm:$0xff] %vm303, %v545
  %v550 = vsel %vm544, %v542, %v427
  %552 = vrot.lane.b32.xlu0 %v536, 64
  %v553 = vpop.permute.xlu0 %552
  %v555 = vsel %vm544, %v553, %v432
  %s556 = smul.u32 3, 2
  %s557 = smul.addr %s556, 8
  %s558 = scalar_lea.vmem [#allocation2], %s557
  %v559 = vld [vmem:[%s558] sm:$0xff]
  %v560 = vld [vmem:[%s558 + $0x8] sm:$0xff]
  %v562 = vsel %vm195, %v550, 0
  %564 = vmatpush.msra.mxu0 0.0
  %565 = vmatpush.msra.mxu0 0.0
  %566 = vmatpush.msra.mxu0 0.0
  %567 = vmatpush.msra.mxu0 0.0
  %568 = vmatpush.msra.mxu0 0.0
  %569 = vmatpush.msra.mxu0 0.0
  %570 = vmatpush.msra.mxu0 0.0
  %571 = vmatpush.msra.mxu0 0.0
  %572 = vmatpush.msra.mxu0 %v40
  %573 = vmatpush.msra.mxu0 %v38
  %574 = vmatpush.msra.mxu0 %v36
  %575 = vmatpush.msra.mxu0 %v34
  %576 = vmatpush.msra.mxu0 %v32
  %577 = vmatpush.msra.mxu0 %v30
  %578 = vmatpush.msra.mxu0 %v28
  %579 = vmatpush.msra.mxu0 %v26
  %580 = vmatmul.f32.gmra.mxu0 %v562
  %v581 = vpop.f32.mrf.mxu0
  %v582 = vadd.f32 0.0, %v581
  %583 = vdwg.mxu0
  %584 = vmatpush.msra.mxu0 0.0
  %585 = vmatpush.msra.mxu0 0.0
  %586 = vmatpush.msra.mxu0 0.0
  %587 = vmatpush.msra.mxu0 0.0
  %588 = vmatpush.msra.mxu0 0.0
  %589 = vmatpush.msra.mxu0 0.0
  %590 = vmatpush.msra.mxu0 0.0
  %591 = vmatpush.msra.mxu0 0.0
  %592 = vmatpush.msra.mxu0 %v41
  %593 = vmatpush.msra.mxu0 %v39
  %594 = vmatpush.msra.mxu0 %v37
  %595 = vmatpush.msra.mxu0 %v35
  %596 = vmatpush.msra.mxu0 %v33
  %597 = vmatpush.msra.mxu0 %v31
  %598 = vmatpush.msra.mxu0 %v29
  %599 = vmatpush.msra.mxu0 %v27
  %600 = vmatmul.f32.gmra.mxu0 %v562
  %v601 = vpop.f32.mrf.mxu0
  %v602 = vadd.f32 0.0, %v601
  %603 = vdwg.mxu0
  %v604 = vadd.f32 %v559, %v582
  %v605 = vadd.f32 %v560, %v602
  %v606 = vxor.u32 %v604, 2147483648
  %v607 = vxor.u32 %v605, 2147483648
  %v608 = vmul.f32 %v606, 1.442695
  %v609 = vpow.pop %v608
  %v610 = vmul.f32 %v607, 1.442695
  %v611 = vpow.pop %v610
  %v612 = vadd.f32 %v609, 1.0
  %v613 = vadd.f32 %v611, 1.0
  %v614 = vrcp.pop %v612
  %v615 = vmul.f32 %v612, %v614
  %v616 = vsub.f32 1.0, %v615
  %v617 = vmul.f32 %v614, %v616
  %v618 = vadd.f32 %v614, %v617
  %vm619 = vweird.f32 %v612
  %vm620 = vweird.f32 %v614
  %vm621 = vmor %vm619, %vm620
  %v622 = vsel %vm621, %v614, %v618
  %v623 = vand.u32 2147483647, %v612
  %vm624 = vcmp.eq.f32.partialorder %v623, 8.507059e+37
  %v625 = vand.u32 %v612, 2147483648
  %v626 = vor.u32 1.1754944e-38, %v625
  %v627 = vsel %vm624, %v626, %v622
  %v628 = vmul.f32 1.0, %v627
  %v629 = vrcp.pop %v613
  %v630 = vmul.f32 %v613, %v629
  %v631 = vsub.f32 1.0, %v630
  %v632 = vmul.f32 %v629, %v631
  %v633 = vadd.f32 %v629, %v632
  %vm634 = vweird.f32 %v613
  %vm635 = vweird.f32 %v629
  %vm636 = vmor %vm634, %vm635
  %v637 = vsel %vm636, %v629, %v633
  %v638 = vand.u32 2147483647, %v613
  %vm639 = vcmp.eq.f32.partialorder %v638, 8.507059e+37
  %v640 = vand.u32 %v613, 2147483648
  %v641 = vor.u32 1.1754944e-38, %v640
  %v642 = vsel %vm639, %v641, %v637
  %v643 = vmul.f32 1.0, %v642
  %v644 = vtanh.pop %v605
  %646 = vrot.lane.b32.xlu0 %v555, 64
  %v647 = vpop.permute.xlu0 %646
  %v649 = vmul.f32 %v628, %v647
  %651 = vrot.lane.b32.xlu0 %v644, 64
  %v652 = vpop.permute.xlu0 %651
  %v654 = vmul.f32 %v628, %v652
  %656 = vrot.lane.b32.xlu0 %v654, 64
  %v657 = vpop.permute.xlu0 %656
  %v659 = vadd.f32 %v649, %v657
  %v660 = vtanh.pop %v659
  %662 = vrot.lane.b32.xlu0 %v660, 64
  %v663 = vpop.permute.xlu0 %662
  %v665 = vmul.f32 %v643, %v663
  %v666 = vsel %vm48, 3, 4
  %vm667 = vcmp.lt.s32.totalorder %v666, %v45
  %v668 = vsel %vm667, %v665, 0.0
  %s669 = scalar_lea.vmem [#allocation3], 24
  %670 = vst.msk [vmem:[%s669] sm:$0xff] %vm300, %v668
  %s671 = scalar_lea.vmem [#allocation3], 32
  %672 = vst.msk [vmem:[%s671] sm:$0xff] %vm303, %v668
  %v673 = vsel %vm667, %v665, %v550
  %675 = vrot.lane.b32.xlu0 %v659, 64
  %v676 = vpop.permute.xlu0 %675
  %v678 = vsel %vm667, %v676, %v555
  %s679 = smul.u32 4, 2
  %s680 = smul.addr %s679, 8
  %s681 = scalar_lea.vmem [#allocation2], %s680
  %v682 = vld [vmem:[%s681] sm:$0xff]
  %v683 = vld [vmem:[%s681 + $0x8] sm:$0xff]
  %v685 = vsel %vm195, %v673, 0
  %687 = vmatpush.msra.mxu0 0.0
  %688 = vmatpush.msra.mxu0 0.0
  %689 = vmatpush.msra.mxu0 0.0
  %690 = vmatpush.msra.mxu0 0.0
  %691 = vmatpush.msra.mxu0 0.0
  %692 = vmatpush.msra.mxu0 0.0
  %693 = vmatpush.msra.mxu0 0.0
  %694 = vmatpush.msra.mxu0 0.0
  %695 = vmatpush.msra.mxu0 %v40
  %696 = vmatpush.msra.mxu0 %v38
  %697 = vmatpush.msra.mxu0 %v36
  %698 = vmatpush.msra.mxu0 %v34
  %699 = vmatpush.msra.mxu0 %v32
  %700 = vmatpush.msra.mxu0 %v30
  %701 = vmatpush.msra.mxu0 %v28
  %702 = vmatpush.msra.mxu0 %v26
  %703 = vmatmul.f32.gmra.mxu0 %v685
  %v704 = vpop.f32.mrf.mxu0
  %v705 = vadd.f32 0.0, %v704
  %706 = vdwg.mxu0
  %707 = vmatpush.msra.mxu0 0.0
  %708 = vmatpush.msra.mxu0 0.0
  %709 = vmatpush.msra.mxu0 0.0
  %710 = vmatpush.msra.mxu0 0.0
  %711 = vmatpush.msra.mxu0 0.0
  %712 = vmatpush.msra.mxu0 0.0
  %713 = vmatpush.msra.mxu0 0.0
  %714 = vmatpush.msra.mxu0 0.0
  %715 = vmatpush.msra.mxu0 %v41
  %716 = vmatpush.msra.mxu0 %v39
  %717 = vmatpush.msra.mxu0 %v37
  %718 = vmatpush.msra.mxu0 %v35
  %719 = vmatpush.msra.mxu0 %v33
  %720 = vmatpush.msra.mxu0 %v31
  %721 = vmatpush.msra.mxu0 %v29
  %722 = vmatpush.msra.mxu0 %v27
  %723 = vmatmul.f32.gmra.mxu0 %v685
  %v724 = vpop.f32.mrf.mxu0
  %v725 = vadd.f32 0.0, %v724
  %726 = vdwg.mxu0
  %v727 = vadd.f32 %v682, %v705
  %v728 = vadd.f32 %v683, %v725
  %v729 = vxor.u32 %v727, 2147483648
  %v730 = vxor.u32 %v728, 2147483648
  %v731 = vmul.f32 %v729, 1.442695
  %v732 = vpow.pop %v731
  %v733 = vmul.f32 %v730, 1.442695
  %v734 = vpow.pop %v733
  %v735 = vadd.f32 %v732, 1.0
  %v736 = vadd.f32 %v734, 1.0
  %v737 = vrcp.pop %v735
  %v738 = vmul.f32 %v735, %v737
  %v739 = vsub.f32 1.0, %v738
  %v740 = vmul.f32 %v737, %v739
  %v741 = vadd.f32 %v737, %v740
  %vm742 = vweird.f32 %v735
  %vm743 = vweird.f32 %v737
  %vm744 = vmor %vm742, %vm743
  %v745 = vsel %vm744, %v737, %v741
  %v746 = vand.u32 2147483647, %v735
  %vm747 = vcmp.eq.f32.partialorder %v746, 8.507059e+37
  %v748 = vand.u32 %v735, 2147483648
  %v749 = vor.u32 1.1754944e-38, %v748
  %v750 = vsel %vm747, %v749, %v745
  %v751 = vmul.f32 1.0, %v750
  %v752 = vrcp.pop %v736
  %v753 = vmul.f32 %v736, %v752
  %v754 = vsub.f32 1.0, %v753
  %v755 = vmul.f32 %v752, %v754
  %v756 = vadd.f32 %v752, %v755
  %vm757 = vweird.f32 %v736
  %vm758 = vweird.f32 %v752
  %vm759 = vmor %vm757, %vm758
  %v760 = vsel %vm759, %v752, %v756
  %v761 = vand.u32 2147483647, %v736
  %vm762 = vcmp.eq.f32.partialorder %v761, 8.507059e+37
  %v763 = vand.u32 %v736, 2147483648
  %v764 = vor.u32 1.1754944e-38, %v763
  %v765 = vsel %vm762, %v764, %v760
  %v766 = vmul.f32 1.0, %v765
  %v767 = vtanh.pop %v728
  %769 = vrot.lane.b32.xlu0 %v678, 64
  %v770 = vpop.permute.xlu0 %769
  %v772 = vmul.f32 %v751, %v770
  %774 = vrot.lane.b32.xlu0 %v767, 64
  %v775 = vpop.permute.xlu0 %774
  %v777 = vmul.f32 %v751, %v775
  %779 = vrot.lane.b32.xlu0 %v777, 64
  %v780 = vpop.permute.xlu0 %779
  %v782 = vadd.f32 %v772, %v780
  %v783 = vtanh.pop %v782
  %785 = vrot.lane.b32.xlu0 %v783, 64
  %v786 = vpop.permute.xlu0 %785
  %v788 = vmul.f32 %v766, %v786
  %v789 = vsel %vm48, 4, 3
  %vm790 = vcmp.lt.s32.totalorder %v789, %v45
  %v791 = vsel %vm790, %v788, 0.0
  %792 = vst.msk [vmem:[%s671] sm:$0xff] %vm300, %v791
  %793 = vst.msk [vmem:[%s669] sm:$0xff] %vm303, %v791
  %v794 = vsel %vm790, %v788, %v673
  %796 = vrot.lane.b32.xlu0 %v782, 64
  %v797 = vpop.permute.xlu0 %796
  %v799 = vsel %vm790, %v797, %v678
  %s800 = smul.u32 5, 2
  %s801 = smul.addr %s800, 8
  %s802 = scalar_lea.vmem [#allocation2], %s801
  %v803 = vld [vmem:[%s802] sm:$0xff]
  %v804 = vld [vmem:[%s802 + $0x8] sm:$0xff]
  %v806 = vsel %vm195, %v794, 0
  %808 = vmatpush.msra.mxu0 0.0
  %809 = vmatpush.msra.mxu0 0.0
  %810 = vmatpush.msra.mxu0 0.0
  %811 = vmatpush.msra.mxu0 0.0
  %812 = vmatpush.msra.mxu0 0.0
  %813 = vmatpush.msra.mxu0 0.0
  %814 = vmatpush.msra.mxu0 0.0
  %815 = vmatpush.msra.mxu0 0.0
  %816 = vmatpush.msra.mxu0 %v40
  %817 = vmatpush.msra.mxu0 %v38
  %818 = vmatpush.msra.mxu0 %v36
  %819 = vmatpush.msra.mxu0 %v34
  %820 = vmatpush.msra.mxu0 %v32
  %821 = vmatpush.msra.mxu0 %v30
  %822 = vmatpush.msra.mxu0 %v28
  %823 = vmatpush.msra.mxu0 %v26
  %824 = vmatmul.f32.gmra.mxu0 %v806
  %v825 = vpop.f32.mrf.mxu0
  %v826 = vadd.f32 0.0, %v825
  %827 = vdwg.mxu0
  %828 = vmatpush.msra.mxu0 0.0
  %829 = vmatpush.msra.mxu0 0.0
  %830 = vmatpush.msra.mxu0 0.0
  %831 = vmatpush.msra.mxu0 0.0
  %832 = vmatpush.msra.mxu0 0.0
  %833 = vmatpush.msra.mxu0 0.0
  %834 = vmatpush.msra.mxu0 0.0
  %835 = vmatpush.msra.mxu0 0.0
  %836 = vmatpush.msra.mxu0 %v41
  %837 = vmatpush.msra.mxu0 %v39
  %838 = vmatpush.msra.mxu0 %v37
  %839 = vmatpush.msra.mxu0 %v35
  %840 = vmatpush.msra.mxu0 %v33
  %841 = vmatpush.msra.mxu0 %v31
  %842 = vmatpush.msra.mxu0 %v29
  %843 = vmatpush.msra.mxu0 %v27
  %844 = vmatmul.f32.gmra.mxu0 %v806
  %v845 = vpop.f32.mrf.mxu0
  %v846 = vadd.f32 0.0, %v845
  %847 = vdwg.mxu0
  %v848 = vadd.f32 %v803, %v826
  %v849 = vadd.f32 %v804, %v846
  %v850 = vxor.u32 %v848, 2147483648
  %v851 = vxor.u32 %v849, 2147483648
  %v852 = vmul.f32 %v850, 1.442695
  %v853 = vpow.pop %v852
  %v854 = vmul.f32 %v851, 1.442695
  %v855 = vpow.pop %v854
  %v856 = vadd.f32 %v853, 1.0
  %v857 = vadd.f32 %v855, 1.0
  %v858 = vrcp.pop %v856
  %v859 = vmul.f32 %v856, %v858
  %v860 = vsub.f32 1.0, %v859
  %v861 = vmul.f32 %v858, %v860
  %v862 = vadd.f32 %v858, %v861
  %vm863 = vweird.f32 %v856
  %vm864 = vweird.f32 %v858
  %vm865 = vmor %vm863, %vm864
  %v866 = vsel %vm865, %v858, %v862
  %v867 = vand.u32 2147483647, %v856
  %vm868 = vcmp.eq.f32.partialorder %v867, 8.507059e+37
  %v869 = vand.u32 %v856, 2147483648
  %v870 = vor.u32 1.1754944e-38, %v869
  %v871 = vsel %vm868, %v870, %v866
  %v872 = vmul.f32 1.0, %v871
  %v873 = vrcp.pop %v857
  %v874 = vmul.f32 %v857, %v873
  %v875 = vsub.f32 1.0, %v874
  %v876 = vmul.f32 %v873, %v875
  %v877 = vadd.f32 %v873, %v876
  %vm878 = vweird.f32 %v857
  %vm879 = vweird.f32 %v873
  %vm880 = vmor %vm878, %vm879
  %v881 = vsel %vm880, %v873, %v877
  %v882 = vand.u32 2147483647, %v857
  %vm883 = vcmp.eq.f32.partialorder %v882, 8.507059e+37
  %v884 = vand.u32 %v857, 2147483648
  %v885 = vor.u32 1.1754944e-38, %v884
  %v886 = vsel %vm883, %v885, %v881
  %v887 = vmul.f32 1.0, %v886
  %v888 = vtanh.pop %v849
  %890 = vrot.lane.b32.xlu0 %v799, 64
  %v891 = vpop.permute.xlu0 %890
  %v893 = vmul.f32 %v872, %v891
  %895 = vrot.lane.b32.xlu0 %v888, 64
  %v896 = vpop.permute.xlu0 %895
  %v898 = vmul.f32 %v872, %v896
  %900 = vrot.lane.b32.xlu0 %v898, 64
  %v901 = vpop.permute.xlu0 %900
  %v903 = vadd.f32 %v893, %v901
  %v904 = vtanh.pop %v903
  %906 = vrot.lane.b32.xlu0 %v904, 64
  %v907 = vpop.permute.xlu0 %906
  %v909 = vmul.f32 %v887, %v907
  %v910 = vsel %vm48, 5, 2
  %vm911 = vcmp.lt.s32.totalorder %v910, %v45
  %v912 = vsel %vm911, %v909, 0.0
  %913 = vst.msk [vmem:[%s548] sm:$0xff] %vm300, %v912
  %914 = vst.msk [vmem:[%s546] sm:$0xff] %vm303, %v912
  %v915 = vsel %vm911, %v909, %v794
  %917 = vrot.lane.b32.xlu0 %v903, 64
  %v918 = vpop.permute.xlu0 %917
  %v920 = vsel %vm911, %v918, %v799
  %s921 = smul.u32 6, 2
  %s922 = smul.addr %s921, 8
  %s923 = scalar_lea.vmem [#allocation2], %s922
  %v924 = vld [vmem:[%s923] sm:$0xff]
  %v925 = vld [vmem:[%s923 + $0x8] sm:$0xff]
  %v927 = vsel %vm195, %v915, 0
  %929 = vmatpush.msra.mxu0 0.0
  %930 = vmatpush.msra.mxu0 0.0
  %931 = vmatpush.msra.mxu0 0.0
  %932 = vmatpush.msra.mxu0 0.0
  %933 = vmatpush.msra.mxu0 0.0
  %934 = vmatpush.msra.mxu0 0.0
  %935 = vmatpush.msra.mxu0 0.0
  %936 = vmatpush.msra.mxu0 0.0
  %937 = vmatpush.msra.mxu0 %v40
  %938 = vmatpush.msra.mxu0 %v38
  %939 = vmatpush.msra.mxu0 %v36
  %940 = vmatpush.msra.mxu0 %v34
  %941 = vmatpush.msra.mxu0 %v32
  %942 = vmatpush.msra.mxu0 %v30
  %943 = vmatpush.msra.mxu0 %v28
  %944 = vmatpush.msra.mxu0 %v26
  %945 = vmatmul.f32.gmra.mxu0 %v927
  %v946 = vpop.f32.mrf.mxu0
  %v947 = vadd.f32 0.0, %v946
  %948 = vdwg.mxu0
  %949 = vmatpush.msra.mxu0 0.0
  %950 = vmatpush.msra.mxu0 0.0
  %951 = vmatpush.msra.mxu0 0.0
  %952 = vmatpush.msra.mxu0 0.0
  %953 = vmatpush.msra.mxu0 0.0
  %954 = vmatpush.msra.mxu0 0.0
  %955 = vmatpush.msra.mxu0 0.0
  %956 = vmatpush.msra.mxu0 0.0
  %957 = vmatpush.msra.mxu0 %v41
  %958 = vmatpush.msra.mxu0 %v39
  %959 = vmatpush.msra.mxu0 %v37
  %960 = vmatpush.msra.mxu0 %v35
  %961 = vmatpush.msra.mxu0 %v33
  %962 = vmatpush.msra.mxu0 %v31
  %963 = vmatpush.msra.mxu0 %v29
  %964 = vmatpush.msra.mxu0 %v27
  %965 = vmatmul.f32.gmra.mxu0 %v927
  %v966 = vpop.f32.mrf.mxu0
  %v967 = vadd.f32 0.0, %v966
  %968 = vdwg.mxu0
  %v969 = vadd.f32 %v924, %v947
  %v970 = vadd.f32 %v925, %v967
  %v971 = vxor.u32 %v969, 2147483648
  %v972 = vxor.u32 %v970, 2147483648
  %v973 = vmul.f32 %v971, 1.442695
  %v974 = vpow.pop %v973
  %v975 = vmul.f32 %v972, 1.442695
  %v976 = vpow.pop %v975
  %v977 = vadd.f32 %v974, 1.0
  %v978 = vadd.f32 %v976, 1.0
  %v979 = vrcp.pop %v977
  %v980 = vmul.f32 %v977, %v979
  %v981 = vsub.f32 1.0, %v980
  %v982 = vmul.f32 %v979, %v981
  %v983 = vadd.f32 %v979, %v982
  %vm984 = vweird.f32 %v977
  %vm985 = vweird.f32 %v979
  %vm986 = vmor %vm984, %vm985
  %v987 = vsel %vm986, %v979, %v983
  %v988 = vand.u32 2147483647, %v977
  %vm989 = vcmp.eq.f32.partialorder %v988, 8.507059e+37
  %v990 = vand.u32 %v977, 2147483648
  %v991 = vor.u32 1.1754944e-38, %v990
  %v992 = vsel %vm989, %v991, %v987
  %v993 = vmul.f32 1.0, %v992
  %v994 = vrcp.pop %v978
  %v995 = vmul.f32 %v978, %v994
  %v996 = vsub.f32 1.0, %v995
  %v997 = vmul.f32 %v994, %v996
  %v998 = vadd.f32 %v994, %v997
  %vm999 = vweird.f32 %v978
  %vm1000 = vweird.f32 %v994
  %vm1001 = vmor %vm999, %vm1000
  %v1002 = vsel %vm1001, %v994, %v998
  %v1003 = vand.u32 2147483647, %v978
  %vm1004 = vcmp.eq.f32.partialorder %v1003, 8.507059e+37
  %v1005 = vand.u32 %v978, 2147483648
  %v1006 = vor.u32 1.1754944e-38, %v1005
  %v1007 = vsel %vm1004, %v1006, %v1002
  %v1008 = vmul.f32 1.0, %v1007
  %v1009 = vtanh.pop %v970
  %1011 = vrot.lane.b32.xlu0 %v920, 64
  %v1012 = vpop.permute.xlu0 %1011
  %v1014 = vmul.f32 %v993, %v1012
  %1016 = vrot.lane.b32.xlu0 %v1009, 64
  %v1017 = vpop.permute.xlu0 %1016
  %v1019 = vmul.f32 %v993, %v1017
  %1021 = vrot.lane.b32.xlu0 %v1019, 64
  %v1022 = vpop.permute.xlu0 %1021
  %v1024 = vadd.f32 %v1014, %v1022
  %v1025 = vtanh.pop %v1024
  %1027 = vrot.lane.b32.xlu0 %v1025, 64
  %v1028 = vpop.permute.xlu0 %1027
  %v1030 = vmul.f32 %v1008, %v1028
  %v1031 = vsel %vm48, 6, 1
  %vm1032 = vcmp.lt.s32.totalorder %v1031, %v45
  %v1033 = vsel %vm1032, %v1030, 0.0
  %1034 = vst.msk [vmem:[%s425] sm:$0xff] %vm300, %v1033
  %1035 = vst.msk [vmem:[%s423] sm:$0xff] %vm303, %v1033
  %v1036 = vsel %vm1032, %v1030, %v915
  %1038 = vrot.lane.b32.xlu0 %v1024, 64
  %v1039 = vpop.permute.xlu0 %1038
  %v1041 = vsel %vm1032, %v1039, %v920
  %s1042 = smul.u32 7, 2
  %s1043 = smul.addr %s1042, 8
  %s1044 = scalar_lea.vmem [#allocation2], %s1043
  %v1045 = vld [vmem:[%s1044] sm:$0xff]
  %v1046 = vld [vmem:[%s1044 + $0x8] sm:$0xff]
  %v1048 = vsel %vm195, %v1036, 0
  %1050 = vmatpush.msra.mxu0 0.0
  %1051 = vmatpush.msra.mxu0 0.0
  %1052 = vmatpush.msra.mxu0 0.0
  %1053 = vmatpush.msra.mxu0 0.0
  %1054 = vmatpush.msra.mxu0 0.0
  %1055 = vmatpush.msra.mxu0 0.0
  %1056 = vmatpush.msra.mxu0 0.0
  %1057 = vmatpush.msra.mxu0 0.0
  %1058 = vmatpush.msra.mxu0 %v40
  %1059 = vmatpush.msra.mxu0 %v38
  %1060 = vmatpush.msra.mxu0 %v36
  %1061 = vmatpush.msra.mxu0 %v34
  %1062 = vmatpush.msra.mxu0 %v32
  %1063 = vmatpush.msra.mxu0 %v30
  %1064 = vmatpush.msra.mxu0 %v28
  %1065 = vmatpush.msra.mxu0 %v26
  %1066 = vmatmul.f32.gmra.mxu0 %v1048
  %v1067 = vpop.f32.mrf.mxu0
  %v1068 = vadd.f32 0.0, %v1067
  %1069 = vdwg.mxu0
  %1070 = vmatpush.msra.mxu0 0.0
  %1071 = vmatpush.msra.mxu0 0.0
  %1072 = vmatpush.msra.mxu0 0.0
  %1073 = vmatpush.msra.mxu0 0.0
  %1074 = vmatpush.msra.mxu0 0.0
  %1075 = vmatpush.msra.mxu0 0.0
  %1076 = vmatpush.msra.mxu0 0.0
  %1077 = vmatpush.msra.mxu0 0.0
  %1078 = vmatpush.msra.mxu0 %v41
  %1079 = vmatpush.msra.mxu0 %v39
  %1080 = vmatpush.msra.mxu0 %v37
  %1081 = vmatpush.msra.mxu0 %v35
  %1082 = vmatpush.msra.mxu0 %v33
  %1083 = vmatpush.msra.mxu0 %v31
  %1084 = vmatpush.msra.mxu0 %v29
  %1085 = vmatpush.msra.mxu0 %v27
  %1086 = vmatmul.f32.gmra.mxu0 %v1048
  %v1087 = vpop.f32.mrf.mxu0
  %v1088 = vadd.f32 0.0, %v1087
  %1089 = vdwg.mxu0
  %v1090 = vadd.f32 %v1045, %v1068
  %v1091 = vadd.f32 %v1046, %v1088
  %v1092 = vxor.u32 %v1090, 2147483648
  %v1093 = vxor.u32 %v1091, 2147483648
  %v1094 = vmul.f32 %v1092, 1.442695
  %v1095 = vpow.pop %v1094
  %v1096 = vmul.f32 %v1093, 1.442695
  %v1097 = vpow.pop %v1096
  %v1098 = vadd.f32 %v1095, 1.0
  %v1099 = vadd.f32 %v1097, 1.0
  %v1100 = vrcp.pop %v1098
  %v1101 = vmul.f32 %v1098, %v1100
  %v1102 = vsub.f32 1.0, %v1101
  %v1103 = vmul.f32 %v1100, %v1102
  %v1104 = vadd.f32 %v1100, %v1103
  %vm1105 = vweird.f32 %v1098
  %vm1106 = vweird.f32 %v1100
  %vm1107 = vmor %vm1105, %vm1106
  %v1108 = vsel %vm1107, %v1100, %v1104
  %v1109 = vand.u32 2147483647, %v1098
  %vm1110 = vcmp.eq.f32.partialorder %v1109, 8.507059e+37
  %v1111 = vand.u32 %v1098, 2147483648
  %v1112 = vor.u32 1.1754944e-38, %v1111
  %v1113 = vsel %vm1110, %v1112, %v1108
  %v1114 = vmul.f32 1.0, %v1113
  %v1115 = vrcp.pop %v1099
  %v1116 = vmul.f32 %v1099, %v1115
  %v1117 = vsub.f32 1.0, %v1116
  %v1118 = vmul.f32 %v1115, %v1117
  %v1119 = vadd.f32 %v1115, %v1118
  %vm1120 = vweird.f32 %v1099
  %vm1121 = vweird.f32 %v1115
  %vm1122 = vmor %vm1120, %vm1121
  %v1123 = vsel %vm1122, %v1115, %v1119
  %v1124 = vand.u32 2147483647, %v1099
  %vm1125 = vcmp.eq.f32.partialorder %v1124, 8.507059e+37
  %v1126 = vand.u32 %v1099, 2147483648
  %v1127 = vor.u32 1.1754944e-38, %v1126
  %v1128 = vsel %vm1125, %v1127, %v1123
  %v1129 = vmul.f32 1.0, %v1128
  %v1130 = vtanh.pop %v1091
  %1132 = vrot.lane.b32.xlu0 %v1041, 64
  %v1133 = vpop.permute.xlu0 %1132
  %v1135 = vmul.f32 %v1114, %v1133
  %1137 = vrot.lane.b32.xlu0 %v1130, 64
  %v1138 = vpop.permute.xlu0 %1137
  %v1140 = vmul.f32 %v1114, %v1138
  %1142 = vrot.lane.b32.xlu0 %v1140, 64
  %v1143 = vpop.permute.xlu0 %1142
  %v1145 = vadd.f32 %v1135, %v1143
  %v1146 = vtanh.pop %v1145
  %1148 = vrot.lane.b32.xlu0 %v1146, 64
  %v1149 = vpop.permute.xlu0 %1148
  %v1151 = vmul.f32 %v1129, %v1149
  %v1152 = vsel %vm48, 7, 0
  %vm1153 = vcmp.lt.s32.totalorder %v1152, %v45
  %v1154 = vsel %vm1153, %v1151, 0.0
  %1155 = vst.msk [vmem:[%s302] sm:$0xff] %vm300, %v1154
  %1156 = vst.msk [vmem:[#allocation3] sm:$0xff] %vm303, %v1154
  %v1157 = vld [vmem:[#allocation3] sm:$0xff]
  %v1158 = vld [vmem:[#allocation3 + $0x8] sm:$0xff]
  %v1159 = vld [vmem:[#allocation3 + $0x10] sm:$0xff]
  %v1160 = vld [vmem:[#allocation3 + $0x18] sm:$0xff]
  %v1161 = vld [vmem:[#allocation3 + $0x20] sm:$0xff]
  %v1162 = vld [vmem:[#allocation3 + $0x28] sm:$0xff]
  %v1163 = vld [vmem:[#allocation3 + $0x30] sm:$0xff]
  %v1164 = vld [vmem:[#allocation3 + $0x38] sm:$0xff]
  %v1165 = vld [vmem:[%s5] sm:$0xff]
  %v1166 = vld [vmem:[%s5 + $0x8] sm:$0xff]
  %v1167 = vld [vmem:[%s5 + $0x10] sm:$0xff]
  %v1168 = vld [vmem:[%s5 + $0x18] sm:$0xff]
  %v1169 = vld [vmem:[%s5 + $0x20] sm:$0xff]
  %v1170 = vld [vmem:[%s5 + $0x28] sm:$0xff]
  %v1171 = vld [vmem:[%s5 + $0x30] sm:$0xff]
  %v1172 = vld [vmem:[%s5 + $0x38] sm:$0xff]
  %v1173 = vld [vmem:[%s6] sm:$0x1]
  %v1175 = vperm.slane %v1173, 0
  %v1178 = vsel %vm195, %v1157, 0
  %v1181 = vsel %vm195, %v1158, 0
  %v1184 = vsel %vm195, %v1159, 0
  %v1187 = vsel %vm195, %v1160, 0
  %v1190 = vsel %vm195, %v1161, 0
  %v1193 = vsel %vm195, %v1162, 0
  %v1196 = vsel %vm195, %v1163, 0
  %v1199 = vsel %vm195, %v1164, 0
  %1201 = vmatpush.msra.mxu0 0.0
  %1202 = vmatpush.msra.mxu0 0.0
  %1203 = vmatpush.msra.mxu0 0.0
  %1204 = vmatpush.msra.mxu0 0.0
  %1205 = vmatpush.msra.mxu0 0.0
  %1206 = vmatpush.msra.mxu0 0.0
  %1207 = vmatpush.msra.mxu0 0.0
  %1208 = vmatpush.msra.mxu0 0.0
  %1209 = vmatpush.msra.mxu0 %v1172
  %1210 = vmatpush.msra.mxu0 %v1171
  %1211 = vmatpush.msra.mxu0 %v1170
  %1212 = vmatpush.msra.mxu0 %v1169
  %1213 = vmatpush.msra.mxu0 %v1168
  %1214 = vmatpush.msra.mxu0 %v1167
  %1215 = vmatpush.msra.mxu0 %v1166
  %1216 = vmatpush.msra.mxu0 %v1165
  %1217 = vmatmul.f32.gmra.mxu0 %v1178
  %v1218 = vpop.f32.mrf.mxu0
  %v1219 = vadd.f32 %v1175, %v1218
  %1220 = vmatmul.f32.gmra.mxu0 %v1181
  %v1221 = vpop.f32.mrf.mxu0
  %v1222 = vadd.f32 %v1175, %v1221
  %1223 = vmatmul.f32.gmra.mxu0 %v1184
  %v1224 = vpop.f32.mrf.mxu0
  %v1225 = vadd.f32 %v1175, %v1224
  %1226 = vmatmul.f32.gmra.mxu0 %v1187
  %v1227 = vpop.f32.mrf.mxu0
  %v1228 = vadd.f32 %v1175, %v1227
  %1229 = vmatmul.f32.gmra.mxu0 %v1190
  %v1230 = vpop.f32.mrf.mxu0
  %v1231 = vadd.f32 %v1175, %v1230
  %1232 = vmatmul.f32.gmra.mxu0 %v1193
  %v1233 = vpop.f32.mrf.mxu0
  %v1234 = vadd.f32 %v1175, %v1233
  %1235 = vmatmul.f32.gmra.mxu0 %v1196
  %v1236 = vpop.f32.mrf.mxu0
  %v1237 = vadd.f32 %v1175, %v1236
  %1238 = vmatmul.f32.gmra.mxu0 %v1199
  %v1239 = vpop.f32.mrf.mxu0
  %v1240 = vadd.f32 %v1175, %v1239
  %1241 = vdwg.mxu0
  %1242 = vst [vmem:[%s7] sm:$0xff] %v1219
  %1243 = vst [vmem:[%s7 + $0x8] sm:$0xff] %v1222
  %1244 = vst [vmem:[%s7 + $0x10] sm:$0xff] %v1225
  %1245 = vst [vmem:[%s7 + $0x18] sm:$0xff] %v1228
  %1246 = vst [vmem:[%s7 + $0x20] sm:$0xff] %v1231
  %1247 = vst [vmem:[%s7 + $0x28] sm:$0xff] %v1234
  %1248 = vst [vmem:[%s7 + $0x30] sm:$0xff] %v1237
  %1249 = vst [vmem:[%s7 + $0x38] sm:$0xff] %v1240
  // Predicated region
  $region30: #{stroke_ctc_forward.1} parent=0 // pred_check
    _
  $region31: #{stroke_ctc_forward.1} parent=0 // pred_check_branch
    %1251 = sbr.rel (0) target = $region33
  $region32: #{stroke_ctc_forward.1} parent=0 // pred_region
    _
  $region33: #{stroke_ctc_forward.1} parent=0 // pred_fallthru
    _
  // Predicated region
  $region34: #{stroke_ctc_forward.1} parent=0 // pred_check
    _
  $region35: #{stroke_ctc_forward.1} parent=0 // pred_check_branch
    %1253 = sbr.rel (0) target = $region37
  $region36: #{stroke_ctc_forward.1} parent=0 // pred_region
    _
  $region37: #{stroke_ctc_forward.1} parent=0 // pred_fallthru
    _

</llo_original>
